<compile_context>
chip_gen: v7x
topology: tpu7x:2x2x1
jax: 0.10.0
libtpu: 0.0.40
codegen_flags: <defaults>
</compile_context>

<pallas_src>
import functools
import numpy as np
import jax
import jax.numpy as jnp
from jax import lax
from jax.experimental import pallas as pl
from jax.experimental.pallas import tpu as pltpu

POS_THRESHOLD = 0.5
ALPHA = 0.25          # focal alpha
GAMMA = 2.0           # focal gamma (hard-coded as (1-pt)^2 below)
BBOX_STD = (0.1, 0.1, 0.2, 0.2)
_INV_STD = tuple(1.0 / s for s in BBOX_STD)


def _detection_loss_kernel(cls_ref, bbox_ref, anc_ref, tgt_ref, tgtrow_ref,
                           cls_out_ref, reg_out_ref, npos_out_ref,
                           cls_acc, reg_acc, npos_acc,
                           *, compute_dtype):
    inner = pl.program_id(2)

    @pl.when(inner == 0)
    def _():
        cls_acc[...] = jnp.zeros_like(cls_acc)
        reg_acc[...] = jnp.zeros_like(reg_acc)
        npos_acc[...] = jnp.zeros_like(npos_acc)

    logits = cls_ref[0]                      # (C, TA) bf16 straight from DMA
    preds = bbox_ref[0]                      # (4, TA) f32
    af = anc_ref[...]                        # (8, TA) f32 precomputed anchor features
    tgt = tgt_ref[0]                         # (M, 8)  f32
    tgt_rows = tgtrow_ref[0]                 # (16, M) bf16 hi/lo target rows

    C, TA = logits.shape
    M = tgt.shape[0]

    ax1 = af[0:1, :]; ay1 = af[1:2, :]; ax2 = af[2:3, :]; ay2 = af[3:4, :]
    inv_w = af[4:5, :]; inv_h = af[5:6, :]
    a_valid = af[6:7, :]                     # 1.0 real anchor, 0.0 lane padding
    aw = ax2 - ax1
    ah = ay2 - ay1
    acx = ax1 + 0.5 * aw
    acy = ay1 + 0.5 * ah

    bx1 = tgt[:, 0:1]; by1 = tgt[:, 1:2]; bx2 = tgt[:, 2:3]; by2 = tgt[:, 3:4]
    t_valid = tgt[:, 5:6]                    # (M, 1)

    # ---------------- IoU: M targets on sublanes x TA anchors on lanes -------
    area_a = aw * ah                                             # (1, TA)
    area_b = (bx2 - bx1) * (by2 - by1)                           # (M, 1)
    iw = jnp.maximum(jnp.minimum(ax2, bx2) - jnp.maximum(ax1, bx1), 0.0)
    ih = jnp.maximum(jnp.minimum(ay2, by2) - jnp.maximum(ay1, by1), 0.0)
    inter = iw * ih                                              # (M, TA)
    union = area_a + area_b - inter
    iou = inter / (union + 1e-6)
    iou = jnp.where(t_valid > 0.0, iou, -1e9)                    # mask padded targets

    # ---------- assignment: first-occurrence argmax over targets (sublanes) --
    max_iou = jnp.max(iou, axis=0, keepdims=True)                # (1, TA)
    row = lax.broadcasted_iota(jnp.int32, (M, TA), 0)
    first_idx = jnp.min(jnp.where(iou == max_iou, row, M), axis=0, keepdims=True)
    assign = (row == first_idx).astype(jnp.bfloat16)             # (M, TA) exact 0/1

    pos_f = jnp.where(max_iou >= POS_THRESHOLD, 1.0, 0.0) * a_valid   # (1, TA) f32
    is_pos = pos_f > 0.0

    # ---- gather assigned-target rows with one small MXU matmul (idle unit) ----
    # rows: 0-3 hi(x1,y1,x2,y2), 4-7 lo(x1,y1,x2,y2), 8 label. bf16 x {0,1} is exact,
    # f32 accumulation; hi+lo recovers near-f32 coordinates.
    gathered = jnp.dot(tgt_rows, assign, preferred_element_type=jnp.float32)  # (16, TA)
    t_x1 = gathered[0:1, :] + gathered[4:5, :]
    t_y1 = gathered[1:2, :] + gathered[5:6, :]
    t_x2 = gathered[2:3, :] + gathered[6:7, :]
    t_y2 = gathered[3:4, :] + gathered[7:8, :]
    assigned_lab = (gathered[8:9, :] + 0.5).astype(jnp.int32)    # (1, TA) exact ints

    # ------------------- focal classification loss ----------------------------
    # is_one built directly from an int compare; the one-hot target is never
    # materialized and `-logits*target` becomes where(is_one, -x, 0).
    x = logits.astype(compute_dtype)                             # bf16 on v6e/v7x, f32 on v5e
    ci = lax.broadcasted_iota(jnp.int32, (C, TA), 0)
    is_one = jnp.logical_and(ci == assigned_lab, is_pos)         # (C, TA) bool

    e = jnp.exp(-jnp.abs(x))                                     # single EUP exp, compute_dtype
    r = 1.0 / (1.0 + e)
    probs = jnp.where(x >= 0.0, r, 1.0 - r)                      # == sigmoid(x)
    pt = jnp.where(is_one, probs, 1.0 - probs)
    omp = 1.0 - pt
    fw = omp * omp                                               # gamma = 2
    focal_w = jnp.where(is_one, ALPHA * fw, (1.0 - ALPHA) * fw)
    # softplus term + class-axis reduction kept in f32 (per review / numerics)
    softplus = jnp.log(1.0 + e.astype(jnp.float32))
    bce = (jnp.maximum(x, 0.0) - jnp.where(is_one, x, 0.0)).astype(jnp.float32) + softplus
    per_elem = focal_w.astype(jnp.float32) * bce                 # (C, TA) f32
    cls_per_anchor = jnp.sum(per_elem, axis=0, keepdims=True)    # (1, TA) f32

    # -------------- smooth-L1 box regression on positives --------------------
    tw = t_x2 - t_x1
    th = t_y2 - t_y1
    tcx = t_x1 + 0.5 * tw
    tcy = t_y1 + 0.5 * th
    dx = (tcx - acx) * inv_w * _INV_STD[0]
    dy = (tcy - acy) * inv_h * _INV_STD[1]
    dw = jnp.log(jnp.where(is_pos, tw * inv_w, 1.0)) * _INV_STD[2]   # guard log on non-pos
    dh = jnp.log(jnp.where(is_pos, th * inv_h, 1.0)) * _INV_STD[3]
    tdeltas = jnp.concatenate([dx, dy, dw, dh], axis=0)          # (4, TA)
    d = preds - tdeltas
    ad = jnp.abs(d)
    sl1 = jnp.where(ad < 1.0, 0.5 * ad * ad, ad - 0.5)           # (4, TA)
    reg_per_anchor = jnp.sum(sl1, axis=0, keepdims=True) * pos_f  # (1, TA)

    # ---- lane-wise accumulation; cross-lane reduce + normalization deferred ----
    cls_acc[...] += cls_per_anchor * a_valid
    reg_acc[...] += reg_per_anchor
    npos_acc[...] += pos_f

    @pl.when(inner == pl.num_programs(2) - 1)
    def _():
        cls_out_ref[...] = cls_acc[...].reshape(1, 1, TA)
        reg_out_ref[...] = reg_acc[...].reshape(1, 1, TA)
        npos_out_ref[...] = npos_acc[...].reshape(1, 1, TA)


def _pick_anchor_tile(A, max_tile=4096):
    """Anchor tile size: multiple of 128, capped at 4096 (v7x has 64 MiB VMEM)."""
    a128 = ((A + 127) // 128) * 128
    return min(a128, max_tile)


def _use_bf16_compute():
    """bf16 elementwise path only on chips with bf16 VPU/EUP (v6e / v7x)."""
    try:
        kind = jax.devices()[0].device_kind.lower()
    except Exception:
        return False
    return not any(f"v{g}" in kind for g in (2, 3, 4, 5))


def detection_loss(cls_logits_list, bbox_preds_list, anchors_list,
                   target_boxes, target_labels, target_valid,
                   cls_weight=1.0, bbox_weight=1.0,
                   anchor_tile=None, num_anchor_groups=None):
    """Pallas implementation of DetectionLoss.forward (use_focal_loss=True).

    target_boxes:  (B, M, 4) zero-padded
    target_labels: (B, M)    int class ids (padded entries ignored)
    target_valid:  (B, M)    1.0 for real targets, 0.0 for padding
    """
    # Glue (plain JAX, same as torch.cat in the module)
    cls_logits = jnp.concatenate(cls_logits_list, axis=1)                  # (B, A, C)
    bbox_preds = jnp.concatenate(bbox_preds_list, axis=1)                  # (B, A, 4)
    anchors = jnp.concatenate(anchors_list, axis=0).astype(jnp.float32)    # (A, 4)
    B, A, C = cls_logits.shape
    M = target_boxes.shape[1]

    TA = anchor_tile if anchor_tile is not None else _pick_anchor_tile(A)
    TA = ((TA + 127) // 128) * 128
    n_t = -(-A // TA)                                  # anchor tiles needed
    if num_anchor_groups is None:
        # v7x megacore: when the batch axis alone can't feed both TensorCores,
        # split the anchor axis into parallel groups instead.
        G = 1 if B > 1 else min(2, n_t)
    else:
        G = max(1, min(num_anchor_groups, n_t))
    n_inner = -(-n_t // G)
    A_pad = G * n_inner * TA
    pad = A_pad - A

    use_bf16 = _use_bf16_compute()
    compute_dtype = jnp.bfloat16 if use_bf16 else jnp.float32

    # lane-major layouts: anchor axis on the 128-lane axis. Cast to bf16 BEFORE the
    # transpose so the transpose writes half the bytes. Ideally the detection head
    # would emit (B, C, A) bf16 directly and this reshuffle disappears entirely.
    cls_t = jnp.transpose(cls_logits.astype(jnp.bfloat16), (0, 2, 1))      # (B, C, A)
    bbox_t = jnp.transpose(bbox_preds.astype(jnp.float32), (0, 2, 1))      # (B, 4, A)
    if pad:
        # Keep the pad: relying on OOB last-tile reads can push garbage through exp.
        cls_t = jnp.pad(cls_t, ((0, 0), (0, 0), (0, pad)))
        bbox_t = jnp.pad(bbox_t, ((0, 0), (0, 0), (0, pad)))

    # anchor-only derived quantities hoisted out of the per-image loop (8 f32 rows,
    # reciprocals precomputed so the kernel never divides by anchor sizes)
    if pad:
        pad_anchor = jnp.broadcast_to(jnp.array([0.0, 0.0, 1.0, 1.0], jnp.float32),
                                      (pad, 4))
        anchors_p = jnp.concatenate([anchors, pad_anchor], axis=0)         # (A_pad, 4)
    else:
        anchors_p = anchors
    ax1 = anchors_p[:, 0]
    ay1 = anchors_p[:, 1]
    ax2 = anchors_p[:, 2]
    ay2 = anchors_p[:, 3]
    aw = ax2 - ax1
    ah = ay2 - ay1
    a_valid = (jnp.arange(A_pad) < A).astype(jnp.float32)
    anchor_feats = jnp.stack(
        [ax1, ay1, ax2, ay2, 1.0 / aw, 1.0 / ah, a_valid,
         jnp.zeros((A_pad,), jnp.float32)], axis=0)                        # (8, A_pad)

    tb = target_boxes.astype(jnp.float32)
    tv = target_valid.astype(jnp.float32)
    lab_f = target_labels.astype(jnp.float32)[..., None]
    tgt = jnp.concatenate(
        [tb, lab_f, tv[..., None], jnp.zeros((B, M, 2), jnp.float32)], axis=-1)  # (B, M, 8)

    # Target rows for the in-kernel MXU gather, hi/lo split so a plain bf16 MXU pass
    # against the exact 0/1 assignment matrix stays (near-)exact.
    tb_hi = tb.astype(jnp.bfloat16).astype(jnp.float32)
    tb_lo = tb - tb_hi
    tgt_rows = jnp.concatenate(
        [tb_hi, tb_lo, lab_f, jnp.zeros((B, M, 7), jnp.float32)], axis=-1)  # (B, M, 16)
    tgt_rows = jnp.transpose(tgt_rows, (0, 2, 1)).astype(jnp.bfloat16)      # (B, 16, M)

    out_shape = tuple(jax.ShapeDtypeStruct((B, G, TA), jnp.float32) for _ in range(3))

    kernel = functools.partial(_detection_loss_kernel, compute_dtype=compute_dtype)

    # scoped-VMEM limit sized from C and TA (double-buffered blocks + scratch + headroom)
    vmem_limit = int(
        2 * (C * TA * 2 + 4 * TA * 4 + 8 * TA * 4 + M * 8 * 4 + 16 * M * 2 + 3 * TA * 4)
        + 3 * TA * 4 + (16 << 20))
    vmem_limit = min(vmem_limit, 96 << 20)

    cls_part, reg_part, npos_part = pl.pallas_call(
        kernel,
        out_shape=out_shape,
        grid_spec=pltpu.PrefetchScalarGridSpec(
            num_scalar_prefetch=0,
            grid=(B, G, n_inner),
            in_specs=[
                pl.BlockSpec((1, C, TA), lambda b, g, i: (b, 0, g * n_inner + i)),
                pl.BlockSpec((1, 4, TA), lambda b, g, i: (b, 0, g * n_inner + i)),
                pl.BlockSpec((8, TA), lambda b, g, i: (0, g * n_inner + i)),
                pl.BlockSpec((1, M, 8), lambda b, g, i: (b, 0, 0)),
                pl.BlockSpec((1, 16, M), lambda b, g, i: (b, 0, 0)),
            ],
            out_specs=[
                pl.BlockSpec((1, 1, TA), lambda b, g, i: (b, g, 0)),
                pl.BlockSpec((1, 1, TA), lambda b, g, i: (b, g, 0)),
                pl.BlockSpec((1, 1, TA), lambda b, g, i: (b, g, 0)),
            ],
            scratch_shapes=[pltpu.VMEM((1, TA), jnp.float32)] * 3,
        ),
        compiler_params=pltpu.CompilerParams(
            dimension_semantics=("parallel", "parallel", "arbitrary"),
            vmem_limit_bytes=vmem_limit),
    )(cls_t, bbox_t, anchor_feats, tgt, tgt_rows)

    # Final cross-lane reductions and per-image normalization (cheap, XLA side).
    cls_sum = jnp.sum(cls_part, axis=(1, 2))                               # (B,)
    reg_sum = jnp.sum(reg_part, axis=(1, 2))
    npos = jnp.sum(npos_part, axis=(1, 2))
    has_target = (jnp.sum(tv, axis=1) > 0.0).astype(jnp.float32)           # "continue" skip
    denom = jnp.maximum(npos, 1.0)
    cls_loss_b = has_target * cls_sum / denom
    reg_loss_b = has_target * reg_sum / denom
    batch_cls_loss = jnp.sum(cls_loss_b) / B
    batch_reg_loss = jnp.sum(reg_loss_b) / B
    total_loss = cls_weight * batch_cls_loss + bbox_weight * batch_reg_loss
    return total_loss, batch_cls_loss, batch_reg_loss


# ------------------------- plain-numpy reference (PyTorch semantics) ----------
def _reference(cls_logits, bbox_preds, anchors, boxes_list, labels_list):
    B = cls_logits.shape[0]
    cls_total, reg_total = 0.0, 0.0
    for b in range(B):
        logits = cls_logits[b]
        preds = bbox_preds[b]
        boxes = boxes_list[b]
        labels = labels_list[b]
        if boxes.shape[0] == 0:
            continue
        area1 = (anchors[:, 2] - anchors[:, 0]) * (anchors[:, 3] - anchors[:, 1])
        area2 = (boxes[:, 2] - boxes[:, 0]) * (boxes[:, 3] - boxes[:, 1])
        lt = np.maximum(anchors[:, None, :2], boxes[None, :, :2])
        rb = np.minimum(anchors[:, None, 2:], boxes[None, :, 2:])
        wh = np.clip(rb - lt, 0, None)
        inter = wh[:, :, 0] * wh[:, :, 1]
        union = area1[:, None] + area2[None, :] - inter
        iou = inter / (union + 1e-6)
        max_iou = iou.max(axis=1)
        idx = iou.argmax(axis=1)
        pos = max_iou >= POS_THRESHOLD
        num_pos = int(pos.sum())
        cls_t = np.zeros_like(logits)
        if num_pos > 0:
            cls_t[pos, labels[idx[pos]]] = 1.0
        probs = 1.0 / (1.0 + np.exp(-logits))
        pt = np.where(cls_t == 1.0, probs, 1.0 - probs)
        af = np.where(cls_t == 1.0, ALPHA, 1.0 - ALPHA)
        fw = af * (1.0 - pt) ** 2
        bce = np.maximum(logits, 0.0) - logits * cls_t + np.log1p(np.exp(-np.abs(logits)))
        cls_loss = (fw * bce).sum() / max(1, num_pos)
        if num_pos > 0:
            pa = anchors[pos]
            ab = boxes[idx[pos]]
            aw = pa[:, 2] - pa[:, 0]
            ah = pa[:, 3] - pa[:, 1]
            acx = pa[:, 0] + 0.5 * aw
            acy = pa[:, 1] + 0.5 * ah
            tw = ab[:, 2] - ab[:, 0]
            th = ab[:, 3] - ab[:, 1]
            tcx = ab[:, 0] + 0.5 * tw
            tcy = ab[:, 1] + 0.5 * th
            d = np.stack([(tcx - acx) / aw, (tcy - acy) / ah,
                          np.log(tw / aw), np.log(th / ah)], axis=1)
            d = d / np.array(BBOX_STD, dtype=np.float64)
            x = preds[pos] - d
            a = np.abs(x)
            reg_loss = np.where(a < 1.0, 0.5 * a * a, a - 0.5).sum() / max(1, num_pos)
        else:
            reg_loss = 0.0
        cls_total += cls_loss
        reg_total += reg_loss
    cls_total /= B
    reg_total /= B
    return cls_total + reg_total, cls_total, reg_total


def _build_level_anchors(fm, stride, sizes):
    ys, xs = np.meshgrid(np.arange(fm), np.arange(fm), indexing="ij")
    cx = (xs.reshape(-1) + 0.5) * stride
    cy = (ys.reshape(-1) + 0.5) * stride
    out = []
    for s in sizes:
        out.append(np.stack([cx - s / 2, cy - s / 2, cx + s / 2, cy + s / 2], axis=1))
    return np.concatenate(out, axis=0).astype(np.float32)


if __name__ == "__main__":
    B, C, M = 2, 4, 8
    # two feature levels over a 16x16 image: 8x8x2 = 128 anchors, 4x4x2 = 32 anchors
    anchors_l0 = _build_level_anchors(8, 2.0, (2.0, 3.0))   # (128, 4)
    anchors_l1 = _build_level_anchors(4, 4.0, (4.0, 6.0))   # (32, 4)
    anchors_list = [jnp.asarray(anchors_l0), jnp.asarray(anchors_l1)]

    key = jax.random.PRNGKey(0)
    k0, k1, k2, k3 = jax.random.split(key, 4)
    cls_logits_list = [0.5 * jax.random.normal(k0, (B, 128, C), jnp.float32),
                       0.5 * jax.random.normal(k1, (B, 32, C), jnp.float32)]
    bbox_preds_list = [0.5 * jax.random.normal(k2, (B, 128, 4), jnp.float32),
                       0.5 * jax.random.normal(k3, (B, 32, 4), jnp.float32)]

    # Deterministic targets (some coincide with anchors so positives exist).
    boxes_b0 = np.stack([anchors_l0[10],
                         anchors_l0[77] + np.array([0.2, -0.1, 0.2, 0.1], np.float32),
                         np.array([1.0, 1.0, 5.0, 6.0], np.float32)], axis=0)
    labels_b0 = np.array([1, 3, 0], np.int32)
    boxes_b1 = np.stack([anchors_l1[5],
                         np.array([8.0, 8.0, 12.0, 13.0], np.float32)], axis=0)
    labels_b1 = np.array([2, 1], np.int32)
    boxes_list = [boxes_b0, boxes_b1]
    labels_list = [labels_b0, labels_b1]

    # Pad targets to M per image.
    tgt_boxes = np.zeros((B, M, 4), np.float32)
    tgt_labels = np.zeros((B, M), np.int32)
    tgt_valid = np.zeros((B, M), np.float32)
    for b in range(B):
        n = boxes_list[b].shape[0]
        tgt_boxes[b, :n] = boxes_list[b]
        tgt_labels[b, :n] = labels_list[b]
        tgt_valid[b, :n] = 1.0

    # Reference on the same bf16-rounded logits the kernel DMAs (apples-to-apples).
    cls_bf16 = [np.asarray(x.astype(jnp.bfloat16).astype(jnp.float32))
                for x in cls_logits_list]
    anchors_all = np.concatenate([anchors_l0, anchors_l1], axis=0)
    cls_np = np.concatenate(cls_bf16, axis=1).astype(np.float64)
    bbox_np = np.concatenate([np.asarray(bbox_preds_list[0]),
                              np.asarray(bbox_preds_list[1])], axis=1).astype(np.float64)
    ref_total, ref_cls, ref_reg = _reference(cls_np, bbox_np,
                                             anchors_all.astype(np.float64),
                                             boxes_list, labels_list)

    # Tolerances: bf16 elementwise path (v6e/v7x) drifts more than the f32 path (v5e).
    if _use_bf16_compute():
        cls_rtol, cls_atol = 4e-2, 2e-3
    else:
        cls_rtol, cls_atol = 2e-3, 2e-4
    reg_rtol, reg_atol = 5e-3, 5e-4
    tot_rtol, tot_atol = max(cls_rtol, reg_rtol), max(cls_atol, reg_atol)

    # Exercise: default single-tile path, multi-tile accumulation path, and the
    # anchor-group (megacore) path.
    configs = [
        dict(),
        dict(anchor_tile=128, num_anchor_groups=1),
        dict(anchor_tile=128, num_anchor_groups=2),
    ]
    for cfg in configs:
        total, cls_loss, reg_loss = detection_loss(
            cls_logits_list, bbox_preds_list, anchors_list,
            jnp.asarray(tgt_boxes), jnp.asarray(tgt_labels), jnp.asarray(tgt_valid),
            **cfg)
        jax.block_until_ready((total, cls_loss, reg_loss))
        np.testing.assert_allclose(float(cls_loss), ref_cls, rtol=cls_rtol, atol=cls_atol)
        np.testing.assert_allclose(float(reg_loss), ref_reg, rtol=reg_rtol, atol=reg_atol)
        np.testing.assert_allclose(float(total), ref_total, rtol=tot_rtol, atol=tot_atol)

    print("KERNEL_OK")
</pallas_src>

<mosaic_0001>
module attributes {stable_mosaic.version = 11 : i64} {
  func.func @_detection_loss_kernel(%arg0: i32, %arg1: i32, %arg2: i32, %arg3: memref<1x4x256xbf16, #tpu.memory_space<vmem>>, %arg4: memref<1x4x256xf32, #tpu.memory_space<vmem>>, %arg5: memref<8x256xf32, #tpu.memory_space<vmem>>, %arg6: memref<1x8x8xf32, #tpu.memory_space<vmem>>, %arg7: memref<1x16x8xbf16, #tpu.memory_space<vmem>>, %arg8: memref<1x1x256xf32, #tpu.memory_space<vmem>>, %arg9: memref<1x1x256xf32, #tpu.memory_space<vmem>>, %arg10: memref<1x1x256xf32, #tpu.memory_space<vmem>>, %arg11: memref<1x256xf32, #tpu.memory_space<vmem>>, %arg12: memref<1x256xf32, #tpu.memory_space<vmem>>, %arg13: memref<1x256xf32, #tpu.memory_space<vmem>>) attributes {dimension_semantics = [#tpu.dimension_semantics<parallel>, #tpu.dimension_semantics<parallel>, #tpu.dimension_semantics<arbitrary>], iteration_bounds = array<i64: 2, 1, 1>, scalar_prefetch = 0 : i64, scratch_operands = 3 : i64, tpu.core_type = #tpu.core_type<tc>, window_params = [{transform_indices = @transform_0, window_bounds = array<i64: 1, 4, 256>}, {transform_indices = @transform_1, window_bounds = array<i64: 1, 4, 256>}, {transform_indices = @transform_2, window_bounds = array<i64: 8, 256>}, {transform_indices = @transform_3, window_bounds = array<i64: 1, 8, 8>}, {transform_indices = @transform_4, window_bounds = array<i64: 1, 16, 8>}, {transform_indices = @transform_5, window_bounds = array<i64: 1, 1, 256>}, {transform_indices = @transform_6, window_bounds = array<i64: 1, 1, 256>}, {transform_indices = @transform_7, window_bounds = array<i64: 1, 1, 256>}]} {
    %c0_i32 = arith.constant 0 : i32
    %0 = arith.cmpi eq, %arg2, %c0_i32 : i32
    %1 = arith.extui %0 : i1 to i32
    %c0_i32_0 = arith.constant 0 : i32
    %2 = arith.cmpi ne, %1, %c0_i32_0 : i32
    scf.if %2 {
      %cst_67 = arith.constant 0.000000e+00 : f32
      %207 = vector.broadcast %cst_67 : f32 to vector<1x256xf32>
      %c0_68 = arith.constant 0 : index
      %c0_69 = arith.constant 0 : index
      %208 = vector.load %arg11[%c0_68, %c0_69] : memref<1x256xf32, #tpu.memory_space<vmem>>, vector<1x256xf32>
      tpu.vector_store %arg11[%c0_68, %c0_69], %207 {strides = array<i32>} : memref<1x256xf32, #tpu.memory_space<vmem>>, vector<1x256xf32>,
      %cst_70 = arith.constant 0.000000e+00 : f32
      %209 = vector.broadcast %cst_70 : f32 to vector<1x256xf32>
      %c0_71 = arith.constant 0 : index
      %c0_72 = arith.constant 0 : index
      %210 = vector.load %arg12[%c0_71, %c0_72] : memref<1x256xf32, #tpu.memory_space<vmem>>, vector<1x256xf32>
      tpu.vector_store %arg12[%c0_71, %c0_72], %209 {strides = array<i32>} : memref<1x256xf32, #tpu.memory_space<vmem>>, vector<1x256xf32>,
      %cst_73 = arith.constant 0.000000e+00 : f32
      %211 = vector.broadcast %cst_73 : f32 to vector<1x256xf32>
      %c0_74 = arith.constant 0 : index
      %c0_75 = arith.constant 0 : index
      %212 = vector.load %arg13[%c0_74, %c0_75] : memref<1x256xf32, #tpu.memory_space<vmem>>, vector<1x256xf32>
      tpu.vector_store %arg13[%c0_74, %c0_75], %211 {strides = array<i32>} : memref<1x256xf32, #tpu.memory_space<vmem>>, vector<1x256xf32>,
    } else {
    }
    %c0 = arith.constant 0 : index
    %c0_1 = arith.constant 0 : index
    %c0_2 = arith.constant 0 : index
    %3 = vector.load %arg3[%c0, %c0_1, %c0_2] : memref<1x4x256xbf16, #tpu.memory_space<vmem>>, vector<1x4x256xbf16>
    %4 = vector.shape_cast %3 : vector<1x4x256xbf16> to vector<4x256xbf16>
    %c0_3 = arith.constant 0 : index
    %c0_4 = arith.constant 0 : index
    %c0_5 = arith.constant 0 : index
    %5 = vector.load %arg4[%c0_3, %c0_4, %c0_5] : memref<1x4x256xf32, #tpu.memory_space<vmem>>, vector<1x4x256xf32>
    %6 = vector.shape_cast %5 : vector<1x4x256xf32> to vector<4x256xf32>
    %c0_6 = arith.constant 0 : index
    %c0_7 = arith.constant 0 : index
    %7 = vector.load %arg5[%c0_6, %c0_7] : memref<8x256xf32, #tpu.memory_space<vmem>>, vector<8x256xf32>
    %c0_8 = arith.constant 0 : index
    %c0_9 = arith.constant 0 : index
    %c0_10 = arith.constant 0 : index
    %8 = vector.load %arg6[%c0_8, %c0_9, %c0_10] : memref<1x8x8xf32, #tpu.memory_space<vmem>>, vector<1x8x8xf32>
    %9 = vector.shape_cast %8 : vector<1x8x8xf32> to vector<8x8xf32>
    %c0_11 = arith.constant 0 : index
    %c0_12 = arith.constant 0 : index
    %c0_13 = arith.constant 0 : index
    %10 = vector.load %arg7[%c0_11, %c0_12, %c0_13] : memref<1x16x8xbf16, #tpu.memory_space<vmem>>, vector<1x16x8xbf16>
    %11 = vector.shape_cast %10 : vector<1x16x8xbf16> to vector<16x8xbf16>
    %12 = vector.extract_strided_slice %7 {offsets = [0, 0], sizes = [1, 256], strides = [1, 1]} : vector<8x256xf32> to vector<1x256xf32>
    %13 = vector.extract_strided_slice %7 {offsets = [1, 0], sizes = [1, 256], strides = [1, 1]} : vector<8x256xf32> to vector<1x256xf32>
    %14 = vector.extract_strided_slice %7 {offsets = [2, 0], sizes = [1, 256], strides = [1, 1]} : vector<8x256xf32> to vector<1x256xf32>
    %15 = vector.extract_strided_slice %7 {offsets = [3, 0], sizes = [1, 256], strides = [1, 1]} : vector<8x256xf32> to vector<1x256xf32>
    %16 = vector.extract_strided_slice %7 {offsets = [4, 0], sizes = [1, 256], strides = [1, 1]} : vector<8x256xf32> to vector<1x256xf32>
    %17 = vector.extract_strided_slice %7 {offsets = [5, 0], sizes = [1, 256], strides = [1, 1]} : vector<8x256xf32> to vector<1x256xf32>
    %18 = vector.extract_strided_slice %7 {offsets = [6, 0], sizes = [1, 256], strides = [1, 1]} : vector<8x256xf32> to vector<1x256xf32>
    %19 = arith.subf %14, %12 : vector<1x256xf32>
    %20 = arith.subf %15, %13 : vector<1x256xf32>
    %cst = arith.constant 5.000000e-01 : f32
    %21 = vector.broadcast %cst : f32 to vector<1x256xf32>
    %22 = arith.mulf %21, %19 : vector<1x256xf32>
    %23 = arith.addf %12, %22 : vector<1x256xf32>
    %cst_14 = arith.constant 5.000000e-01 : f32
    %24 = vector.broadcast %cst_14 : f32 to vector<1x256xf32>
    %25 = arith.mulf %24, %20 : vector<1x256xf32>
    %26 = arith.addf %13, %25 : vector<1x256xf32>
    %27 = vector.extract_strided_slice %9 {offsets = [0, 0], sizes = [8, 1], strides = [1, 1]} : vector<8x8xf32> to vector<8x1xf32>
    %28 = vector.extract_strided_slice %9 {offsets = [0, 1], sizes = [8, 1], strides = [1, 1]} : vector<8x8xf32> to vector<8x1xf32>
    %29 = vector.extract_strided_slice %9 {offsets = [0, 2], sizes = [8, 1], strides = [1, 1]} : vector<8x8xf32> to vector<8x1xf32>
    %30 = vector.extract_strided_slice %9 {offsets = [0, 3], sizes = [8, 1], strides = [1, 1]} : vector<8x8xf32> to vector<8x1xf32>
    %31 = vector.extract_strided_slice %9 {offsets = [0, 5], sizes = [8, 1], strides = [1, 1]} : vector<8x8xf32> to vector<8x1xf32>
    %32 = arith.mulf %19, %20 : vector<1x256xf32>
    %33 = arith.subf %29, %27 : vector<8x1xf32>
    %34 = arith.subf %30, %28 : vector<8x1xf32>
    %35 = arith.mulf %33, %34 : vector<8x1xf32>
    %36 = vector.broadcast %14 : vector<1x256xf32> to vector<8x256xf32>
    %37 = vector.broadcast %29 : vector<8x1xf32> to vector<8x256xf32>
    %38 = arith.minimumf %36, %37 : vector<8x256xf32>
    %39 = vector.broadcast %12 : vector<1x256xf32> to vector<8x256xf32>
    %40 = vector.broadcast %27 : vector<8x1xf32> to vector<8x256xf32>
    %41 = arith.maximumf %39, %40 : vector<8x256xf32>
    %42 = arith.subf %38, %41 : vector<8x256xf32>
    %cst_15 = arith.constant 0.000000e+00 : f32
    %43 = vector.broadcast %cst_15 : f32 to vector<8x256xf32>
    %44 = arith.maximumf %42, %43 : vector<8x256xf32>
    %45 = vector.broadcast %15 : vector<1x256xf32> to vector<8x256xf32>
    %46 = vector.broadcast %30 : vector<8x1xf32> to vector<8x256xf32>
    %47 = arith.minimumf %45, %46 : vector<8x256xf32>
    %48 = vector.broadcast %13 : vector<1x256xf32> to vector<8x256xf32>
    %49 = vector.broadcast %28 : vector<8x1xf32> to vector<8x256xf32>
    %50 = arith.maximumf %48, %49 : vector<8x256xf32>
    %51 = arith.subf %47, %50 : vector<8x256xf32>
    %cst_16 = arith.constant 0.000000e+00 : f32
    %52 = vector.broadcast %cst_16 : f32 to vector<8x256xf32>
    %53 = arith.maximumf %51, %52 : vector<8x256xf32>
    %54 = arith.mulf %44, %53 : vector<8x256xf32>
    %55 = vector.broadcast %32 : vector<1x256xf32> to vector<8x256xf32>
    %56 = vector.broadcast %35 : vector<8x1xf32> to vector<8x256xf32>
    %57 = arith.addf %55, %56 : vector<8x256xf32>
    %58 = arith.subf %57, %54 : vector<8x256xf32>
    %cst_17 = arith.constant 9.99999997E-7 : f32
    %59 = vector.broadcast %cst_17 : f32 to vector<8x256xf32>
    %60 = arith.addf %58, %59 : vector<8x256xf32>
    %61 = arith.divf %54, %60 : vector<8x256xf32>
    %cst_18 = arith.constant 0.000000e+00 : f32
    %62 = vector.broadcast %cst_18 : f32 to vector<8x1xf32>
    %63 = arith.cmpf ogt, %31, %62 : vector<8x1xf32>
    %cst_19 = arith.constant -1.000000e+09 : f32
    %64 = vector.shape_cast %63 : vector<8x1xi1> to vector<8x1xi1>
    %65 = vector.broadcast %64 : vector<8x1xi1> to vector<8x256xi1>
    %66 = vector.broadcast %cst_19 : f32 to vector<8x256xf32>
    %67 = arith.select %65, %61, %66 : vector<8x256xi1>, vector<8x256xf32>
    %cst_20 = arith.constant dense<0xFF800000> : vector<256xf32>
    %68 = vector.multi_reduction <maximumf>, %67, %cst_20 [0] : vector<8x256xf32> to vector<256xf32>
    %69 = vector.shape_cast %68 : vector<256xf32> to vector<1x256xf32>
    %70 = tpu.iota {dimensions = array<i32: 0>} : vector<8x256xi32>
    %71 = vector.broadcast %69 : vector<1x256xf32> to vector<8x256xf32>
    %72 = arith.cmpf oeq, %67, %71 : vector<8x256xf32>
    %c8_i32 = arith.constant 8 : i32
    %73 = vector.broadcast %c8_i32 : i32 to vector<8x256xi32>
    %74 = arith.select %72, %70, %73 : vector<8x256xi1>, vector<8x256xi32>
    %cst_21 = arith.constant dense<2147483647> : vector<256xi32>
    %75 = vector.multi_reduction <minsi>, %74, %cst_21 [0] : vector<8x256xi32> to vector<256xi32>
    %76 = vector.shape_cast %75 : vector<256xi32> to vector<1x256xi32>
    %77 = vector.broadcast %76 : vector<1x256xi32> to vector<8x256xi32>
    %78 = arith.cmpi eq, %70, %77 : vector<8x256xi32>
    %79 = arith.extui %78 : vector<8x256xi1> to vector<8x256xi32>
    %80 = arith.sitofp %79 : vector<8x256xi32> to vector<8x256xf32>
    %81 = arith.truncf %80 : vector<8x256xf32> to vector<8x256xbf16>
    %cst_22 = arith.constant 5.000000e-01 : f32
    %82 = vector.broadcast %cst_22 : f32 to vector<1x256xf32>
    %83 = arith.cmpf oge, %69, %82 : vector<1x256xf32>
    %cst_23 = arith.constant 1.000000e+00 : f32
    %cst_24 = arith.constant 0.000000e+00 : f32
    %84 = vector.broadcast %cst_23 : f32 to vector<1x256xf32>
    %85 = vector.broadcast %cst_24 : f32 to vector<1x256xf32>
    %86 = arith.select %83, %84, %85 : vector<1x256xi1>, vector<1x256xf32>
    %87 = arith.mulf %86, %18 : vector<1x256xf32>
    %cst_25 = arith.constant 0.000000e+00 : f32
    %88 = vector.broadcast %cst_25 : f32 to vector<1x256xf32>
    %89 = arith.cmpf ogt, %87, %88 : vector<1x256xf32>
    %cst_26 = arith.constant dense<0.000000e+00> : vector<16x256xf32>
    %90 = tpu.matmul %11, %81, %cst_26 {dimension_numbers = #tpu.dot_dimension_numbers<[1], [0], [0], [1], [0, 0, 1, 1], [], []>} : vector<16x8xbf16>, vector<8x256xbf16>, vector<16x256xf32> -> vector<16x256xf32>
    %91 = vector.extract_strided_slice %90 {offsets = [0, 0], sizes = [1, 256], strides = [1, 1]} : vector<16x256xf32> to vector<1x256xf32>
    %92 = vector.extract_strided_slice %90 {offsets = [4, 0], sizes = [1, 256], strides = [1, 1]} : vector<16x256xf32> to vector<1x256xf32>
    %93 = arith.addf %91, %92 : vector<1x256xf32>
    %94 = vector.extract_strided_slice %90 {offsets = [1, 0], sizes = [1, 256], strides = [1, 1]} : vector<16x256xf32> to vector<1x256xf32>
    %95 = vector.extract_strided_slice %90 {offsets = [5, 0], sizes = [1, 256], strides = [1, 1]} : vector<16x256xf32> to vector<1x256xf32>
    %96 = arith.addf %94, %95 : vector<1x256xf32>
    %97 = vector.extract_strided_slice %90 {offsets = [2, 0], sizes = [1, 256], strides = [1, 1]} : vector<16x256xf32> to vector<1x256xf32>
    %98 = vector.extract_strided_slice %90 {offsets = [6, 0], sizes = [1, 256], strides = [1, 1]} : vector<16x256xf32> to vector<1x256xf32>
    %99 = arith.addf %97, %98 : vector<1x256xf32>
    %100 = vector.extract_strided_slice %90 {offsets = [3, 0], sizes = [1, 256], strides = [1, 1]} : vector<16x256xf32> to vector<1x256xf32>
    %101 = vector.extract_strided_slice %90 {offsets = [7, 0], sizes = [1, 256], strides = [1, 1]} : vector<16x256xf32> to vector<1x256xf32>
    %102 = arith.addf %100, %101 : vector<1x256xf32>
    %103 = vector.extract_strided_slice %90 {offsets = [8, 0], sizes = [1, 256], strides = [1, 1]} : vector<16x256xf32> to vector<1x256xf32>
    %cst_27 = arith.constant 5.000000e-01 : f32
    %104 = vector.broadcast %cst_27 : f32 to vector<1x256xf32>
    %105 = arith.addf %103, %104 : vector<1x256xf32>
    %106 = arith.fptosi %105 : vector<1x256xf32> to vector<1x256xi32>
    %107 = tpu.iota {dimensions = array<i32: 0>} : vector<4x256xi32>
    %108 = vector.broadcast %106 : vector<1x256xi32> to vector<4x256xi32>
    %109 = arith.cmpi eq, %107, %108 : vector<4x256xi32>
    %110 = vector.broadcast %89 : vector<1x256xi1> to vector<4x256xi1>
    %111 = arith.andi %109, %110 : vector<4x256xi1>
    %112 = math.absf %4 : vector<4x256xbf16>
    %cst_28 = arith.constant 0.000000e+00 : bf16
    %113 = vector.broadcast %cst_28 : bf16 to vector<4x256xbf16>
    %114 = arith.subf %113, %112 : vector<4x256xbf16>
    %115 = math.exp %114 : vector<4x256xbf16>
    %cst_29 = arith.constant 1.000000e+00 : bf16
    %116 = vector.broadcast %cst_29 : bf16 to vector<4x256xbf16>
    %117 = arith.addf %116, %115 : vector<4x256xbf16>
    %cst_30 = arith.constant 1.000000e+00 : bf16
    %118 = vector.broadcast %cst_30 : bf16 to vector<4x256xbf16>
    %119 = arith.divf %118, %117 : vector<4x256xbf16>
    %cst_31 = arith.constant 0.000000e+00 : bf16
    %120 = vector.broadcast %cst_31 : bf16 to vector<4x256xbf16>
    %121 = arith.cmpf oge, %4, %120 : vector<4x256xbf16>
    %cst_32 = arith.constant 1.000000e+00 : bf16
    %122 = vector.broadcast %cst_32 : bf16 to vector<4x256xbf16>
    %123 = arith.subf %122, %119 : vector<4x256xbf16>
    %124 = arith.select %121, %119, %123 : vector<4x256xi1>, vector<4x256xbf16>
    %cst_33 = arith.constant 1.000000e+00 : bf16
    %125 = vector.broadcast %cst_33 : bf16 to vector<4x256xbf16>
    %126 = arith.subf %125, %124 : vector<4x256xbf16>
    %127 = arith.select %111, %124, %126 : vector<4x256xi1>, vector<4x256xbf16>
    %cst_34 = arith.constant 1.000000e+00 : bf16
    %128 = vector.broadcast %cst_34 : bf16 to vector<4x256xbf16>
    %129 = arith.subf %128, %127 : vector<4x256xbf16>
    %130 = arith.mulf %129, %129 : vector<4x256xbf16>
    %cst_35 = arith.constant 2.500000e-01 : bf16
    %131 = vector.broadcast %cst_35 : bf16 to vector<4x256xbf16>
    %132 = arith.mulf %131, %130 : vector<4x256xbf16>
    %cst_36 = arith.constant 7.500000e-01 : bf16
    %133 = vector.broadcast %cst_36 : bf16 to vector<4x256xbf16>
    %134 = arith.mulf %133, %130 : vector<4x256xbf16>
    %135 = arith.select %111, %132, %134 : vector<4x256xi1>, vector<4x256xbf16>
    %136 = arith.extf %115 : vector<4x256xbf16> to vector<4x256xf32>
    %cst_37 = arith.constant 1.000000e+00 : f32
    %137 = vector.broadcast %cst_37 : f32 to vector<4x256xf32>
    %138 = arith.addf %137, %136 : vector<4x256xf32>
    %139 = math.log %138 : vector<4x256xf32>
    %cst_38 = arith.constant 0.000000e+00 : bf16
    %140 = vector.broadcast %cst_38 : bf16 to vector<4x256xbf16>
    %141 = arith.maximumf %4, %140 : vector<4x256xbf16>
    %cst_39 = arith.constant 0.000000e+00 : f32
    %142 = arith.truncf %cst_39 : f32 to bf16
    %143 = vector.broadcast %142 : bf16 to vector<4x256xbf16>
    %144 = arith.select %111, %4, %143 : vector<4x256xi1>, vector<4x256xbf16>
    %145 = arith.subf %141, %144 : vector<4x256xbf16>
    %146 = arith.extf %145 : vector<4x256xbf16> to vector<4x256xf32>
    %147 = arith.addf %146, %139 : vector<4x256xf32>
    %148 = arith.extf %135 : vector<4x256xbf16> to vector<4x256xf32>
    %149 = arith.mulf %148, %147 : vector<4x256xf32>
    %cst_40 = arith.constant dense<0.000000e+00> : vector<256xf32>
    %150 = vector.multi_reduction <add>, %149, %cst_40 [0] : vector<4x256xf32> to vector<256xf32>
    %151 = vector.shape_cast %150 : vector<256xf32> to vector<1x256xf32>
    %152 = arith.subf %99, %93 : vector<1x256xf32>
    %153 = arith.subf %102, %96 : vector<1x256xf32>
    %cst_41 = arith.constant 5.000000e-01 : f32
    %154 = vector.broadcast %cst_41 : f32 to vector<1x256xf32>
    %155 = arith.mulf %154, %152 : vector<1x256xf32>
    %156 = arith.addf %93, %155 : vector<1x256xf32>
    %cst_42 = arith.constant 5.000000e-01 : f32
    %157 = vector.broadcast %cst_42 : f32 to vector<1x256xf32>
    %158 = arith.mulf %157, %153 : vector<1x256xf32>
    %159 = arith.addf %96, %158 : vector<1x256xf32>
    %160 = arith.subf %156, %23 : vector<1x256xf32>
    %161 = arith.mulf %160, %16 : vector<1x256xf32>
    %cst_43 = arith.constant 1.000000e+01 : f32
    %162 = vector.broadcast %cst_43 : f32 to vector<1x256xf32>
    %163 = arith.mulf %161, %162 : vector<1x256xf32>
    %164 = arith.subf %159, %26 : vector<1x256xf32>
    %165 = arith.mulf %164, %17 : vector<1x256xf32>
    %cst_44 = arith.constant 1.000000e+01 : f32
    %166 = vector.broadcast %cst_44 : f32 to vector<1x256xf32>
    %167 = arith.mulf %165, %166 : vector<1x256xf32>
    %168 = arith.mulf %152, %16 : vector<1x256xf32>
    %cst_45 = arith.constant 1.000000e+00 : f32
    %169 = vector.broadcast %cst_45 : f32 to vector<1x256xf32>
    %170 = arith.select %89, %168, %169 : vector<1x256xi1>, vector<1x256xf32>
    %171 = math.log %170 : vector<1x256xf32>
    %cst_46 = arith.constant 5.000000e+00 : f32
    %172 = vector.broadcast %cst_46 : f32 to vector<1x256xf32>
    %173 = arith.mulf %171, %172 : vector<1x256xf32>
    %174 = arith.mulf %153, %17 : vector<1x256xf32>
    %cst_47 = arith.constant 1.000000e+00 : f32
    %175 = vector.broadcast %cst_47 : f32 to vector<1x256xf32>
    %176 = arith.select %89, %174, %175 : vector<1x256xi1>, vector<1x256xf32>
    %177 = math.log %176 : vector<1x256xf32>
    %cst_48 = arith.constant 5.000000e+00 : f32
    %178 = vector.broadcast %cst_48 : f32 to vector<1x256xf32>
    %179 = arith.mulf %177, %178 : vector<1x256xf32>
    %180 = tpu.concatenate %163, %167, %173, %179 in 0 : vector<1x256xf32>, vector<1x256xf32>, vector<1x256xf32>, vector<1x256xf32> -> vector<4x256xf32>
    %181 = arith.subf %6, %180 : vector<4x256xf32>
    %182 = math.absf %181 : vector<4x256xf32>
    %cst_49 = arith.constant 1.000000e+00 : f32
    %183 = vector.broadcast %cst_49 : f32 to vector<4x256xf32>
    %184 = arith.cmpf olt, %182, %183 : vector<4x256xf32>
    %cst_50 = arith.constant 5.000000e-01 : f32
    %185 = vector.broadcast %cst_50 : f32 to vector<4x256xf32>
    %186 = arith.mulf %185, %182 : vector<4x256xf32>
    %187 = arith.mulf %186, %182 : vector<4x256xf32>
    %cst_51 = arith.constant 5.000000e-01 : f32
    %188 = vector.broadcast %cst_51 : f32 to vector<4x256xf32>
    %189 = arith.subf %182, %188 : vector<4x256xf32>
    %190 = arith.select %184, %187, %189 : vector<4x256xi1>, vector<4x256xf32>
    %cst_52 = arith.constant dense<0.000000e+00> : vector<256xf32>
    %191 = vector.multi_reduction <add>, %190, %cst_52 [0] : vector<4x256xf32> to vector<256xf32>
    %192 = vector.shape_cast %191 : vector<256xf32> to vector<1x256xf32>
    %193 = arith.mulf %192, %87 : vector<1x256xf32>
    %c0_53 = arith.constant 0 : index
    %c0_54 = arith.constant 0 : index
    %194 = vector.load %arg11[%c0_53, %c0_54] : memref<1x256xf32, #tpu.memory_space<vmem>>, vector<1x256xf32>
    %195 = arith.mulf %151, %18 : vector<1x256xf32>
    %196 = arith.addf %194, %195 : vector<1x256xf32>
    %c0_55 = arith.constant 0 : index
    %c0_56 = arith.constant 0 : index
    %197 = vector.load %arg11[%c0_55, %c0_56] : memref<1x256xf32, #tpu.memory_space<vmem>>, vector<1x256xf32>
    tpu.vector_store %arg11[%c0_55, %c0_56], %196 {strides = array<i32>} : memref<1x256xf32, #tpu.memory_space<vmem>>, vector<1x256xf32>,
    %c0_57 = arith.constant 0 : index
    %c0_58 = arith.constant 0 : index
    %198 = vector.load %arg12[%c0_57, %c0_58] : memref<1x256xf32, #tpu.memory_space<vmem>>, vector<1x256xf32>
    %199 = arith.addf %198, %193 : vector<1x256xf32>
    %c0_59 = arith.constant 0 : index
    %c0_60 = arith.constant 0 : index
    %200 = vector.load %arg12[%c0_59, %c0_60] : memref<1x256xf32, #tpu.memory_space<vmem>>, vector<1x256xf32>
    tpu.vector_store %arg12[%c0_59, %c0_60], %199 {strides = array<i32>} : memref<1x256xf32, #tpu.memory_space<vmem>>, vector<1x256xf32>,
    %c0_61 = arith.constant 0 : index
    %c0_62 = arith.constant 0 : index
    %201 = vector.load %arg13[%c0_61, %c0_62] : memref<1x256xf32, #tpu.memory_space<vmem>>, vector<1x256xf32>
    %202 = arith.addf %201, %87 : vector<1x256xf32>
    %c0_63 = arith.constant 0 : index
    %c0_64 = arith.constant 0 : index
    %203 = vector.load %arg13[%c0_63, %c0_64] : memref<1x256xf32, #tpu.memory_space<vmem>>, vector<1x256xf32>
    tpu.vector_store %arg13[%c0_63, %c0_64], %202 {strides = array<i32>} : memref<1x256xf32, #tpu.memory_space<vmem>>, vector<1x256xf32>,
    %c0_i32_65 = arith.constant 0 : i32
    %204 = arith.cmpi eq, %arg2, %c0_i32_65 : i32
    %205 = arith.extui %204 : i1 to i32
    %c0_i32_66 = arith.constant 0 : i32
    %206 = arith.cmpi ne, %205, %c0_i32_66 : i32
    scf.if %206 {
      %c0_67 = arith.constant 0 : index
      %c0_68 = arith.constant 0 : index
      %207 = vector.load %arg11[%c0_67, %c0_68] : memref<1x256xf32, #tpu.memory_space<vmem>>, vector<1x256xf32>
      %208 = vector.shape_cast %207 : vector<1x256xf32> to vector<1x1x256xf32>
      %c0_69 = arith.constant 0 : index
      %c0_70 = arith.constant 0 : index
      %c0_71 = arith.constant 0 : index
      %209 = vector.load %arg8[%c0_69, %c0_70, %c0_71] : memref<1x1x256xf32, #tpu.memory_space<vmem>>, vector<1x1x256xf32>
      tpu.vector_store %arg8[%c0_69, %c0_70, %c0_71], %208 {strides = array<i32>} : memref<1x1x256xf32, #tpu.memory_space<vmem>>, vector<1x1x256xf32>,
      %c0_72 = arith.constant 0 : index
      %c0_73 = arith.constant 0 : index
      %210 = vector.load %arg12[%c0_72, %c0_73] : memref<1x256xf32, #tpu.memory_space<vmem>>, vector<1x256xf32>
      %211 = vector.shape_cast %210 : vector<1x256xf32> to vector<1x1x256xf32>
      %c0_74 = arith.constant 0 : index
      %c0_75 = arith.constant 0 : index
      %c0_76 = arith.constant 0 : index
      %212 = vector.load %arg9[%c0_74, %c0_75, %c0_76] : memref<1x1x256xf32, #tpu.memory_space<vmem>>, vector<1x1x256xf32>
      tpu.vector_store %arg9[%c0_74, %c0_75, %c0_76], %211 {strides = array<i32>} : memref<1x1x256xf32, #tpu.memory_space<vmem>>, vector<1x1x256xf32>,
      %c0_77 = arith.constant 0 : index
      %c0_78 = arith.constant 0 : index
      %213 = vector.load %arg13[%c0_77, %c0_78] : memref<1x256xf32, #tpu.memory_space<vmem>>, vector<1x256xf32>
      %214 = vector.shape_cast %213 : vector<1x256xf32> to vector<1x1x256xf32>
      %c0_79 = arith.constant 0 : index
      %c0_80 = arith.constant 0 : index
      %c0_81 = arith.constant 0 : index
      %215 = vector.load %arg10[%c0_79, %c0_80, %c0_81] : memref<1x1x256xf32, #tpu.memory_space<vmem>>, vector<1x1x256xf32>
      tpu.vector_store %arg10[%c0_79, %c0_80, %c0_81], %214 {strides = array<i32>} : memref<1x1x256xf32, #tpu.memory_space<vmem>>, vector<1x1x256xf32>,
    } else {
    }
    return
  }
  func.func @transform_0(%arg0: i32, %arg1: i32, %arg2: i32) -> (i32, i32, i32) {
    %c1_i32 = arith.constant 1 : i32
    %0 = arith.muli %arg1, %c1_i32 : i32
    %1 = arith.addi %0, %arg2 : i32
    %c0_i32 = arith.constant 0 : i32
    %c0_i32_0 = arith.constant 0 : i32
    return %arg0, %c0_i32, %1 : i32, i32, i32
  }
  func.func @transform_1(%arg0: i32, %arg1: i32, %arg2: i32) -> (i32, i32, i32) {
    %c1_i32 = arith.constant 1 : i32
    %0 = arith.muli %arg1, %c1_i32 : i32
    %1 = arith.addi %0, %arg2 : i32
    %c0_i32 = arith.constant 0 : i32
    %c0_i32_0 = arith.constant 0 : i32
    return %arg0, %c0_i32, %1 : i32, i32, i32
  }
  func.func @transform_2(%arg0: i32, %arg1: i32, %arg2: i32) -> (i32, i32) {
    %c1_i32 = arith.constant 1 : i32
    %0 = arith.muli %arg1, %c1_i32 : i32
    %1 = arith.addi %0, %arg2 : i32
    %c0_i32 = arith.constant 0 : i32
    %c0_i32_0 = arith.constant 0 : i32
    return %c0_i32, %1 : i32, i32
  }
  func.func @transform_3(%arg0: i32, %arg1: i32, %arg2: i32) -> (i32, i32, i32) {
    %c0_i32 = arith.constant 0 : i32
    %c0_i32_0 = arith.constant 0 : i32
    %c0_i32_1 = arith.constant 0 : i32
    return %arg0, %c0_i32, %c0_i32_0 : i32, i32, i32
  }
  func.func @transform_4(%arg0: i32, %arg1: i32, %arg2: i32) -> (i32, i32, i32) {
    %c0_i32 = arith.constant 0 : i32
    %c0_i32_0 = arith.constant 0 : i32
    %c0_i32_1 = arith.constant 0 : i32
    return %arg0, %c0_i32, %c0_i32_0 : i32, i32, i32
  }
  func.func @transform_5(%arg0: i32, %arg1: i32, %arg2: i32) -> (i32, i32, i32) {
    %c0_i32 = arith.constant 0 : i32
    %c0_i32_0 = arith.constant 0 : i32
    return %arg0, %arg1, %c0_i32 : i32, i32, i32
  }
  func.func @transform_6(%arg0: i32, %arg1: i32, %arg2: i32) -> (i32, i32, i32) {
    %c0_i32 = arith.constant 0 : i32
    %c0_i32_0 = arith.constant 0 : i32
    return %arg0, %arg1, %c0_i32 : i32, i32, i32
  }
  func.func @transform_7(%arg0: i32, %arg1: i32, %arg2: i32) -> (i32, i32, i32) {
    %c0_i32 = arith.constant 0 : i32
    %c0_i32_0 = arith.constant 0 : i32
    return %arg0, %arg1, %c0_i32 : i32, i32, i32
  }
}

</mosaic_0001>

<llo_original>
// kernel: tpu_custom_call.1
$region0: #{tpu_custom_call.1}
  #allocation0 [shape = 'u32[]', space=smem, size = 0x4, offset = 0x4, fixed_abs, tag = 'smem constant byte address 0x4 - core index']
  #allocation1 [shape = 'u32[144,128]{1,0:T(1,128)}', space=vmem, size = 0x12000, scoped, tag = 'internal scratch']
  #allocation2 [shape = 'f32[1,256]{1,0:T(1,128)}', space=vmem, size = 0x400, scoped, tag = 'scratch operand']
  #allocation3 [shape = 'f32[1,256]{1,0:T(1,128)}', space=vmem, size = 0x400, scoped, tag = 'scratch operand']
  #allocation4 [shape = 'f32[1,256]{1,0:T(1,128)}', space=vmem, size = 0x400, scoped, tag = 'scratch operand']
  %s0 = inlined_call_operand.hbm [shape: bf16[2,4,256], index: 0, kind: input, shape index: {}]
  %s1 = inlined_call_operand.vmem [shape: f32[2,4,256], index: 1, kind: input, shape index: {}]
  %s2 = inlined_call_operand.hbm [shape: f32[8,256], index: 2, kind: input, shape index: {}]
  %s3 = inlined_call_operand.vmem [shape: f32[2,8,8], index: 3, kind: input, shape index: {}]
  %s4 = inlined_call_operand.vmem [shape: bf16[2,16,8], index: 4, kind: input, shape index: {}]
  %s5 = inlined_call_operand.hbm [shape: f32[2,1,256], index: 5, kind: output, shape index: {0}]
  %s6 = inlined_call_operand.hbm [shape: f32[2,1,256], index: 6, kind: output, shape index: {1}]
  %s7 = inlined_call_operand.hbm [shape: f32[2,1,256], index: 7, kind: output, shape index: {2}]
  %8 = xla_tuple %s5, %s6, %s7
  %s9 = sld [smem:[#allocation0]]
  $region85: #{tpu_custom_call.1} parent=0
    _
  %s11 = ssub.s32 1, %s9
  %s12 = scalar_select 0, %s11, %s9
  $region1: #{tpu_custom_call.1} parent=0
    #allocation5 [shape = 'u8[4096]{0}', space=vmem, size = 0x1000, scoped, tag = 'input window, operand 0']
    #allocation6 [shape = 's32[2]{0}', space=sflag, size = 0x8, scoped, tag = 'scoped memory for tpu_custom_call.1']
    #allocation7 [shape = 's32[2]{0}', space=sflag, size = 0x8, scoped, tag = 'scoped memory for tpu_custom_call.1']
    #allocation8 [shape = 'u8[8192]{0}', space=vmem, size = 0x2000, scoped, tag = 'input window, operand 2, single buffered']
    #allocation9 [shape = 's32[1]{0}', space=sflag, size = 0x4, scoped, tag = 'scoped memory for tpu_custom_call.1']
    #allocation10 [shape = 'u8[2048]{0}', space=vmem, size = 0x800, scoped, tag = 'output window, operand 0']
    #allocation11 [shape = 'u8[2048]{0}', space=vmem, size = 0x800, scoped, tag = 'output window, operand 1']
    #allocation12 [shape = 's32[2]{0}', space=sflag, size = 0x8, scoped, tag = 'scoped memory for tpu_custom_call.1']
    #allocation13 [shape = 'u8[2048]{0}', space=vmem, size = 0x800, scoped, tag = 'output window, operand 2']
    %13 = vsyncpa [#allocation6], 0
    %s14 = scalar_lea.sflag [#allocation6], 1
    %15 = vsyncpa %s14, 0
    %16 = vsyncpa [#allocation9], 0
    %17 = vsyncpa [#allocation7], 0
    %s18 = scalar_lea.sflag [#allocation7], 1
    %19 = vsyncpa %s18, 0
    %20 = vsyncpa [#allocation12], 0
    %s21 = scalar_lea.sflag [#allocation12], 1
    %22 = vsyncpa %s21, 0
    loop: start=0, step=1, limit=4
    $region2: #{tpu_custom_call.1} parent=1 // loop_pre_header
      _
    $region3: #{tpu_custom_call.1} parent=1 // loop_header
      %s24 = sphi 0, %s28
      %p25 = scmp.ge.s32.totalorder %s24, 4
      %s31 = sphi 0, %s50
      %s32 = sphi 0, %s46
      %s33 = sphi 0, %s42
      %s34 = sphi 0, %s31
      %s35 = sphi 0, %s32
      %s36 = sphi 0, %s33
      %s37 = sphi 0, %s34
      %s38 = sphi 0, %s35
      %s39 = sphi 0, %s36
      %s57 = sphi 0, %s59
      %s60 = sphi 0, %s57
      %s61 = sphi 0, %s60
      %s77 = sphi 0, %s61
      %s87 = sphi 0, %s89
      %s90 = sphi 0, %s87
      %s91 = sphi 0, %s90
      %s107 = sphi 0, %s91
      %s115 = sphi 0, %s117
      %s118 = sphi 0, %s115
      %s119 = sphi 0, %s118
      %s135 = sphi 0, %s119
      %s141 = sphi 0, %s143
      %s144 = sphi 0, %s141
      %s145 = sphi 0, %s144
      %s161 = sphi 0, %s145
      %s167 = sphi 0, %s169
      %s170 = sphi 0, %s167
      %s171 = sphi 0, %s170
      %s187 = sphi 0, %s171
      %s195 = sphi 0, %s197
      %s198 = sphi 0, %s195
      %s199 = sphi 0, %s198
      %s215 = sphi 0, %s199
      %s223 = sphi 0, %s225
      %s226 = sphi 0, %s223
      %s227 = sphi 0, %s226
      %s243 = sphi 0, %s227
      %s251 = sphi 0, %s253
      %s254 = sphi 0, %s251
      %s255 = sphi 0, %s254
      %s271 = sphi 0, %s255
    $region4: #{tpu_custom_call.1} parent=1 // loop_header_branch
      %27 = sbr.rel (%p25) target = $region8
    $region5: #{tpu_custom_call.1} parent=1 // loop_body
      %s29 = ssub.s32 %s24, 1
      %s30 = ssub.s32 %s24, 2
      %s40 = sadd.s32 1, %s33
      %p41 = scmp.ge.s32.totalorder %s40, 1
      %s42 = scalar_select %p41, 0, %s40
      %s43 = sadd.s32 1, %s32
      %s44 = scalar_select %p41, %s43, %s32
      %p45 = scmp.ge.s32.totalorder %s44, 1
      %s46 = scalar_select %p45, 0, %s44
      %s47 = sadd.s32 1, %s31
      %s48 = scalar_select %p45, %s47, %s31
      %p49 = scmp.ge.s32.totalorder %s48, 2
      %s50 = scalar_select %p49, 0, %s48
      %s51 = sadd.s32 %s32, %s33
      %s52 = sadd.s32 %s46, %s42
      %s53 = ssub.s32 %s31, %s50
      %s54 = ssub.s32 %s51, %s52
      %s55 = sor.u32 %s53, %s54
      %p56 = scmp.eq.s32.totalorder %s55, 0
      %s58 = sadd.s32 %s57, 1
      %s59 = scalar_select %p56, %s57, %s58
      %p62 = pneg %p56
      %p63 = scmp.eq.s32.totalorder %s24, 1
      %p64 = por %p62, %p63
      %p65 = scmp.ne.s32.totalorder %s57, %s60
      %p66 = scmp.eq.s32.totalorder %s24, 0
      %p67 = por %p65, %p66
      %p68 = scmp.ne.s32.totalorder %s57, %s60
      %p69 = scmp.eq.s32.totalorder %s29, 1
      %p70 = por %p68, %p69
      %p71 = scmp.ne.s32.totalorder %s60, %s61
      %p72 = scmp.eq.s32.totalorder %s29, 0
      %p73 = por %p71, %p72
      %p74 = scmp.ne.s32.totalorder %s60, %s61
      %p75 = scmp.eq.s32.totalorder %s30, 1
      %p76 = por %p74, %p75
      %p78 = scmp.ne.s32.totalorder %s61, %s77
      %p79 = scmp.eq.s32.totalorder %s30, 0
      %p80 = por %p78, %p79
      %s81 = sadd.s32 %s32, %s33
      %s82 = sadd.s32 %s46, %s42
      %s83 = ssub.s32 %s31, %s50
      %s84 = ssub.s32 %s81, %s82
      %s85 = sor.u32 %s83, %s84
      %p86 = scmp.eq.s32.totalorder %s85, 0
      %s88 = sadd.s32 %s87, 1
      %s89 = scalar_select %p86, %s87, %s88
      %p92 = pneg %p86
      %p93 = scmp.eq.s32.totalorder %s24, 1
      %p94 = por %p92, %p93
      %p95 = scmp.ne.s32.totalorder %s87, %s90
      %p96 = scmp.eq.s32.totalorder %s24, 0
      %p97 = por %p95, %p96
      %p98 = scmp.ne.s32.totalorder %s87, %s90
      %p99 = scmp.eq.s32.totalorder %s29, 1
      %p100 = por %p98, %p99
      %p101 = scmp.ne.s32.totalorder %s90, %s91
      %p102 = scmp.eq.s32.totalorder %s29, 0
      %p103 = por %p101, %p102
      %p104 = scmp.ne.s32.totalorder %s90, %s91
      %p105 = scmp.eq.s32.totalorder %s30, 1
      %p106 = por %p104, %p105
      %p108 = scmp.ne.s32.totalorder %s91, %s107
      %p109 = scmp.eq.s32.totalorder %s30, 0
      %p110 = por %p108, %p109
      %s111 = sadd.s32 %s32, %s33
      %s112 = sadd.s32 %s46, %s42
      %s113 = ssub.s32 %s111, %s112
      %p114 = scmp.eq.s32.totalorder %s113, 0
      %s116 = sadd.s32 %s115, 1
      %s117 = scalar_select %p114, %s115, %s116
      %p120 = pneg %p114
      %p121 = scmp.eq.s32.totalorder %s24, 1
      %p122 = por %p120, %p121
      %p123 = scmp.ne.s32.totalorder %s115, %s118
      %p124 = scmp.eq.s32.totalorder %s24, 0
      %p125 = por %p123, %p124
      %p126 = scmp.ne.s32.totalorder %s115, %s118
      %p127 = scmp.eq.s32.totalorder %s29, 1
      %p128 = por %p126, %p127
      %p129 = scmp.ne.s32.totalorder %s118, %s119
      %p130 = scmp.eq.s32.totalorder %s29, 0
      %p131 = por %p129, %p130
      %p132 = scmp.ne.s32.totalorder %s118, %s119
      %p133 = scmp.eq.s32.totalorder %s30, 1
      %p134 = por %p132, %p133
      %p136 = scmp.ne.s32.totalorder %s119, %s135
      %p137 = scmp.eq.s32.totalorder %s30, 0
      %p138 = por %p136, %p137
      %s139 = ssub.s32 %s31, %s50
      %p140 = scmp.eq.s32.totalorder %s139, 0
      %s142 = sadd.s32 %s141, 1
      %s143 = scalar_select %p140, %s141, %s142
      %p146 = pneg %p140
      %p147 = scmp.eq.s32.totalorder %s24, 1
      %p148 = por %p146, %p147
      %p149 = scmp.ne.s32.totalorder %s141, %s144
      %p150 = scmp.eq.s32.totalorder %s24, 0
      %p151 = por %p149, %p150
      %p152 = scmp.ne.s32.totalorder %s141, %s144
      %p153 = scmp.eq.s32.totalorder %s29, 1
      %p154 = por %p152, %p153
      %p155 = scmp.ne.s32.totalorder %s144, %s145
      %p156 = scmp.eq.s32.totalorder %s29, 0
      %p157 = por %p155, %p156
      %p158 = scmp.ne.s32.totalorder %s144, %s145
      %p159 = scmp.eq.s32.totalorder %s30, 1
      %p160 = por %p158, %p159
      %p162 = scmp.ne.s32.totalorder %s145, %s161
      %p163 = scmp.eq.s32.totalorder %s30, 0
      %p164 = por %p162, %p163
      %s165 = ssub.s32 %s31, %s50
      %p166 = scmp.eq.s32.totalorder %s165, 0
      %s168 = sadd.s32 %s167, 1
      %s169 = scalar_select %p166, %s167, %s168
      %p172 = pneg %p166
      %p173 = scmp.eq.s32.totalorder %s24, 1
      %p174 = por %p172, %p173
      %p175 = scmp.ne.s32.totalorder %s167, %s170
      %p176 = scmp.eq.s32.totalorder %s24, 0
      %p177 = por %p175, %p176
      %p178 = scmp.ne.s32.totalorder %s167, %s170
      %p179 = scmp.eq.s32.totalorder %s29, 1
      %p180 = por %p178, %p179
      %p181 = scmp.ne.s32.totalorder %s170, %s171
      %p182 = scmp.eq.s32.totalorder %s29, 0
      %p183 = por %p181, %p182
      %p184 = scmp.ne.s32.totalorder %s170, %s171
      %p185 = scmp.eq.s32.totalorder %s30, 1
      %p186 = por %p184, %p185
      %p188 = scmp.ne.s32.totalorder %s171, %s187
      %p189 = scmp.eq.s32.totalorder %s30, 0
      %p190 = por %p188, %p189
      %s191 = ssub.s32 %s31, %s50
      %s192 = ssub.s32 %s32, %s46
      %s193 = sor.u32 %s191, %s192
      %p194 = scmp.eq.s32.totalorder %s193, 0
      %s196 = sadd.s32 %s195, 1
      %s197 = scalar_select %p194, %s195, %s196
      %p200 = pneg %p194
      %p201 = scmp.eq.s32.totalorder %s24, 1
      %p202 = por %p200, %p201
      %p203 = scmp.ne.s32.totalorder %s195, %s198
      %p204 = scmp.eq.s32.totalorder %s24, 0
      %p205 = por %p203, %p204
      %p206 = scmp.ne.s32.totalorder %s195, %s198
      %p207 = scmp.eq.s32.totalorder %s29, 1
      %p208 = por %p206, %p207
      %p209 = scmp.ne.s32.totalorder %s198, %s199
      %p210 = scmp.eq.s32.totalorder %s29, 0
      %p211 = por %p209, %p210
      %p212 = scmp.ne.s32.totalorder %s198, %s199
      %p213 = scmp.eq.s32.totalorder %s30, 1
      %p214 = por %p212, %p213
      %p216 = scmp.ne.s32.totalorder %s199, %s215
      %p217 = scmp.eq.s32.totalorder %s30, 0
      %p218 = por %p216, %p217
      %s219 = ssub.s32 %s31, %s50
      %s220 = ssub.s32 %s32, %s46
      %s221 = sor.u32 %s219, %s220
      %p222 = scmp.eq.s32.totalorder %s221, 0
      %s224 = sadd.s32 %s223, 1
      %s225 = scalar_select %p222, %s223, %s224
      %p228 = pneg %p222
      %p229 = scmp.eq.s32.totalorder %s24, 1
      %p230 = por %p228, %p229
      %p231 = scmp.ne.s32.totalorder %s223, %s226
      %p232 = scmp.eq.s32.totalorder %s24, 0
      %p233 = por %p231, %p232
      %p234 = scmp.ne.s32.totalorder %s223, %s226
      %p235 = scmp.eq.s32.totalorder %s29, 1
      %p236 = por %p234, %p235
      %p237 = scmp.ne.s32.totalorder %s226, %s227
      %p238 = scmp.eq.s32.totalorder %s29, 0
      %p239 = por %p237, %p238
      %p240 = scmp.ne.s32.totalorder %s226, %s227
      %p241 = scmp.eq.s32.totalorder %s30, 1
      %p242 = por %p240, %p241
      %p244 = scmp.ne.s32.totalorder %s227, %s243
      %p245 = scmp.eq.s32.totalorder %s30, 0
      %p246 = por %p244, %p245
      %s247 = ssub.s32 %s31, %s50
      %s248 = ssub.s32 %s32, %s46
      %s249 = sor.u32 %s247, %s248
      %p250 = scmp.eq.s32.totalorder %s249, 0
      %s252 = sadd.s32 %s251, 1
      %s253 = scalar_select %p250, %s251, %s252
      %p256 = pneg %p250
      %p257 = scmp.eq.s32.totalorder %s24, 1
      %p258 = por %p256, %p257
      %p259 = scmp.ne.s32.totalorder %s251, %s254
      %p260 = scmp.eq.s32.totalorder %s24, 0
      %p261 = por %p259, %p260
      %p262 = scmp.ne.s32.totalorder %s251, %s254
      %p263 = scmp.eq.s32.totalorder %s29, 1
      %p264 = por %p262, %p263
      %p265 = scmp.ne.s32.totalorder %s254, %s255
      %p266 = scmp.eq.s32.totalorder %s29, 0
      %p267 = por %p265, %p266
      %p268 = scmp.ne.s32.totalorder %s254, %s255
      %p269 = scmp.eq.s32.totalorder %s30, 1
      %p270 = por %p268, %p269
      %p272 = scmp.ne.s32.totalorder %s255, %s271
      %p273 = scmp.eq.s32.totalorder %s30, 0
      %p274 = por %p272, %p273
      %p275 = scmp.le.s32.totalorder 1, %s24
      %p276 = scmp.lt.s32.totalorder %s24, 3
      %p277 = pnand %p275, %p276
      %p278 = pneg %p277
      // Predicated region
      $region9: #{tpu_custom_call.1} parent=5 // pred_check
        _
      $region10: #{tpu_custom_call.1} parent=5 // pred_check_branch
        %280 = sbr.rel (%p277) target = $region12
      $region11: #{tpu_custom_call.1} parent=5 // pred_region
        %s281 = ssub.s32 %s24, 1
        // Predicated region
        $region13: #{tpu_custom_call.1} parent=11 // pred_check
          %p282 = pneg %p131
        $region14: #{tpu_custom_call.1} parent=11 // pred_check_branch
          %284 = sbr.rel (%p282) target = $region16
        $region15: #{tpu_custom_call.1} parent=11 // pred_region
          %s285 = sadd.s32 %s35, %s36
          %s286 = smul.u32 2, %s285
          %s288 = ssub.s32 256, 256
          %289 = vsyncadd [#allocation9], %s288
          %s290 = smul.addr %s286, 128
          %s291 = scalar_lea.hbm %s2, %s290
          %s293 = sshll.u32 [#allocation8], 4
          %s294 = int_to_ptr.vmem [resolvable:$true] %s293
          %296 = dma.hbm_to_vmem [thread:$0]  %s291, 256, %s294, [#allocation9]
        $region16: #{tpu_custom_call.1} parent=11 // pred_fallthru
          _
      $region12: #{tpu_custom_call.1} parent=5 // pred_fallthru
        _
      %p297 = scmp.lt.s32.totalorder %s24, 2
      // Predicated region
      $region17: #{tpu_custom_call.1} parent=5 // pred_check
        %p298 = pneg %p297
      $region18: #{tpu_custom_call.1} parent=5 // pred_check_branch
        %300 = sbr.rel (%p298) target = $region20
      $region19: #{tpu_custom_call.1} parent=5 // pred_region
        // Predicated region
        $region21: #{tpu_custom_call.1} parent=19 // pred_check
          %p301 = pneg %p67
        $region22: #{tpu_custom_call.1} parent=19 // pred_check_branch
          %303 = sbr.rel (%p301) target = $region24
        $region23: #{tpu_custom_call.1} parent=19 // pred_region
          %s304 = sand.u32 %s57, 1
          %s305 = scalar_lea.sflag [#allocation6], %s304
          %s306 = sand.u32 %s57, 1
          %s307 = smul.addr %s306, 4
          %s308 = scalar_lea.vmem [#allocation5], %s307
          %s309 = sadd.s32 %s32, %s33
          %s310 = smul.u32 2, %s309
          %s312 = ssub.s32 64, 64
          %313 = vsyncadd %s305, %s312
          %s314 = smul.addr %s31, 2
          %s315 = sadd.s32 %s310, %s314
          %s316 = smul.addr %s315, 32
          %s317 = scalar_lea.hbm %s0, %s316
          %s319 = sshll.u32 %s308, 4
          %s320 = int_to_ptr.vmem [resolvable:$true] %s319
          %322 = dma.hbm_to_vmem [thread:$0]  %s317, 64, %s320, %s305
        $region24: #{tpu_custom_call.1} parent=19 // pred_fallthru
          _
        // Predicated region
        $region25: #{tpu_custom_call.1} parent=19 // pred_check
          %p323 = pneg %p97
        $region26: #{tpu_custom_call.1} parent=19 // pred_check_branch
          %325 = sbr.rel (%p323) target = $region28
        $region27: #{tpu_custom_call.1} parent=19 // pred_region
          %s326 = sadd.s32 %s32, %s33
          %s327 = smul.u32 2, %s326
          %p328 = scmp.lt.s32.totalorder %s31, 1
          %s329 = scalar_select %p328, %s31, 1
          %p330 = scmp.lt.s32.totalorder %s327, 1
          %s331 = scalar_select %p330, %s327, 1
          %s332 = smul.addr %s329, 2
          %s333 = sadd.s32 %s331, %s332
          %s334 = smul.addr %s333, 4
          %s335 = scalar_lea.vmem %s1, %s334
          %s336 = sadd.s32 %s32, %s33
          %s337 = smul.u32 2, %s336
        $region28: #{tpu_custom_call.1} parent=19 // pred_fallthru
          _
        // Predicated region
        $region29: #{tpu_custom_call.1} parent=19 // pred_check
          %p338 = pneg %p151
        $region30: #{tpu_custom_call.1} parent=19 // pred_check_branch
          %340 = sbr.rel (%p338) target = $region32
        $region31: #{tpu_custom_call.1} parent=19 // pred_region
          %p341 = scmp.lt.s32.totalorder %s31, 1
          %s342 = scalar_select %p341, %s31, 1
          %s343 = smul.addr %s342, 8
          %s344 = scalar_lea.vmem %s3, %s343
        $region32: #{tpu_custom_call.1} parent=19 // pred_fallthru
          _
        // Predicated region
        $region33: #{tpu_custom_call.1} parent=19 // pred_check
          %p345 = pneg %p177
        $region34: #{tpu_custom_call.1} parent=19 // pred_check_branch
          %347 = sbr.rel (%p345) target = $region36
        $region35: #{tpu_custom_call.1} parent=19 // pred_region
          %p348 = scmp.lt.s32.totalorder %s31, 1
          %s349 = scalar_select %p348, %s31, 1
          %s350 = smul.addr %s349, 2
          %s351 = smul.addr %s350, 4
          %s352 = scalar_lea.vmem %s4, %s351
        $region36: #{tpu_custom_call.1} parent=19 // pred_fallthru
          _
      $region20: #{tpu_custom_call.1} parent=5 // pred_fallthru
        _
      %p353 = scmp.le.s32.totalorder 1, %s24
      %p354 = scmp.lt.s32.totalorder %s24, 3
      %p355 = pnand %p353, %p354
      %p356 = pneg %p355
      // Predicated region
      $region37: #{tpu_custom_call.1} parent=5 // pred_check
        _
      $region38: #{tpu_custom_call.1} parent=5 // pred_check_branch
        %358 = sbr.rel (%p355) target = $region40
      $region39: #{tpu_custom_call.1} parent=5 // pred_region
        %s359 = ssub.s32 %s24, 1
        %s360 = sand.u32 %s60, 1
        %s361 = scalar_lea.sflag [#allocation6], %s360
        %s362 = sand.u32 %s60, 1
        %s363 = smul.addr %s362, 4
        %s364 = scalar_lea.vmem [#allocation5], %s363
        // Predicated region
        $region41: #{tpu_custom_call.1} parent=39 // pred_check
          %p365 = pneg %p73
        $region42: #{tpu_custom_call.1} parent=39 // pred_check_branch
          %367 = sbr.rel (%p365) target = $region44
        $region43: #{tpu_custom_call.1} parent=39 // pred_region
          %368 = dma.done %s361, 64
        $region44: #{tpu_custom_call.1} parent=39 // pred_fallthru
          _
        // Predicated region
        $region45: #{tpu_custom_call.1} parent=39 // pred_check
          %p369 = pneg %p131
        $region46: #{tpu_custom_call.1} parent=39 // pred_check_branch
          %371 = sbr.rel (%p369) target = $region48
        $region47: #{tpu_custom_call.1} parent=39 // pred_region
          %372 = dma.done [#allocation9], 256
        $region48: #{tpu_custom_call.1} parent=39 // pred_fallthru
          _
        %s373 = sand.u32 %s60, 1
        %s374 = scalar_lea.sflag [#allocation6], %s373
        %s375 = sand.u32 %s60, 1
        %s376 = smul.addr %s375, 4
        %s377 = scalar_lea.vmem [#allocation5], %s376
        %p378 = pneg %p73
        %p379 = pneg %p70
        %s380 = sadd.s32 %s35, %s36
        %s381 = smul.u32 2, %s380
        %p382 = scmp.lt.s32.totalorder %s34, 1
        %s383 = scalar_select %p382, %s34, 1
        %p384 = scmp.lt.s32.totalorder %s381, 1
        %s385 = scalar_select %p384, %s381, 1
        %s386 = smul.addr %s383, 2
        %s387 = sadd.s32 %s385, %s386
        %s388 = smul.addr %s387, 4
        %s389 = scalar_lea.vmem %s1, %s388
        %p390 = pneg %p103
        %p391 = pneg %p100
        %p392 = pneg %p131
        %p393 = pneg %p128
        %p394 = scmp.lt.s32.totalorder %s34, 1
        %s395 = scalar_select %p394, %s34, 1
        %s396 = smul.addr %s395, 8
        %s397 = scalar_lea.vmem %s3, %s396
        %p398 = pneg %p157
        %p399 = pneg %p154
        %p400 = scmp.lt.s32.totalorder %s34, 1
        %s401 = scalar_select %p400, %s34, 1
        %s402 = smul.addr %s401, 2
        %s403 = smul.addr %s402, 4
        %s404 = scalar_lea.vmem %s4, %s403
        %p405 = pneg %p183
        %p406 = pneg %p180
        %p407 = pneg %p211
        %p408 = pneg %p208
        %s409 = sand.u32 %s198, 1
        %s410 = scalar_lea.sflag [#allocation7], %s409
        %s411 = sand.u32 %s198, 1
        %s412 = smul.addr %s411, 2
        %s413 = scalar_lea.vmem [#allocation10], %s412
        %p414 = pneg %p239
        %p415 = pneg %p236
        %s416 = sand.u32 %s29, 1
        %s417 = scalar_lea.sflag [#allocation12], %s416
        %s418 = sand.u32 %s226, 1
        %s419 = smul.addr %s418, 2
        %s420 = scalar_lea.vmem [#allocation11], %s419
        %p421 = pneg %p267
        %p422 = pneg %p264
        %s423 = sand.u32 %s29, 1
        %s424 = scalar_lea.sflag [#allocation12], %s423
        %s425 = sand.u32 %s254, 1
        %s426 = smul.addr %s425, 2
        %s427 = scalar_lea.vmem [#allocation13], %s426
        %s428 = sadd.s32 %s35, %s36
        %s429 = smul.u32 2, %s428
        %s430 = sadd.s32 %s35, %s36
        %s431 = smul.u32 2, %s430
        %p432 = scmp.lt.s32.totalorder %s34, 1
        %s433 = scalar_select %p432, %s34, 1
        %p434 = scmp.lt.s32.totalorder %s431, 1
        %s435 = scalar_select %p434, %s431, 1
        %s436 = smul.addr %s433, 2
        %s437 = sadd.s32 %s435, %s436
        %s438 = smul.addr %s437, 4
        %s439 = scalar_lea.vmem %s1, %s438
        %s440 = sadd.s32 %s35, %s36
        %s441 = smul.u32 2, %s440
        %s442 = sadd.s32 %s35, %s36
        %s443 = smul.u32 2, %s442
        %p444 = scmp.lt.s32.totalorder %s34, 1
        %s445 = scalar_select %p444, %s34, 1
        %s446 = smul.addr %s445, 8
        %s447 = scalar_lea.vmem %s3, %s446
        %p448 = scmp.lt.s32.totalorder %s34, 1
        %s449 = scalar_select %p448, %s34, 1
        %s450 = smul.addr %s449, 2
        %s451 = smul.addr %s450, 4
        %s452 = scalar_lea.vmem %s4, %s451
        %p458 = scmp.eq.s32.totalorder %s36, 0
        // Predicated region
        $region49: #{tpu_custom_call.1} parent=39 // pred_check
          %p459 = pneg %p458
        $region50: #{tpu_custom_call.1} parent=39 // pred_check_branch
          %461 = sbr.rel (%p459) target = $region52
        $region51: #{tpu_custom_call.1} parent=39 // pred_region
          %v462 = vlaneseq
          %vm463 = vcmp.ge.s32.totalorder %v462, 0
          %vm464 = vcmp.lt.s32.totalorder %v462, 256
          %vm465 = vmand %vm463, %vm464
          %466 = vst.msk [vmem:[#allocation2] sm:$0x3] %vm465, 0.0
          %467 = vst.msk [vmem:[#allocation3] sm:$0x3] %vm465, 0.0
          %468 = vst.msk [vmem:[#allocation4] sm:$0x3] %vm465, 0.0
        $region52: #{tpu_custom_call.1} parent=39 // pred_fallthru
          _
        %v469 = vld [vmem:[%s364] sm:$0xf]
        %v470 = vld [vmem:[%s439] sm:$0xff]
        %v471 = vld [vmem:[#allocation8] sm:$0xff]
        %v472 = vld [vmem:[#allocation8 + $0x8] sm:$0xff]
        %v473 = vld [vmem:[%s447] sm:$0xff]
        %v474 = vld [vmem:[%s452] sm:$0xf]
        %v475 = vld [vmem:[%s452 + $0x4] sm:$0xf]
        %v478 = vrot.slane %v471, 6
        %v479 = vrot.slane %v472, 6
        %v482 = vsub.f32 %v471, %v478
        %v483 = vsub.f32 %v472, %v479
        %v484 = vmul.f32 %v482, 0.5
        %v485 = vmul.f32 %v483, 0.5
        %v488 = vrot.slane %v484, 2
        %v489 = vrot.slane %v485, 2
        %v492 = vadd.f32 %v471, %v488
        %v493 = vadd.f32 %v472, %v489
        %v496 = vrot.slane %v482, 1
        %v497 = vrot.slane %v483, 1
        %v500 = vmul.f32 %v482, %v496
        %v501 = vmul.f32 %v483, %v497
        %503 = vrot.lane.b32.xlu0 %v473, 2
        %v504 = vpop.permute.xlu0 %503
        %v506 = vsub.f32 %v473, %v504
        %508 = vrot.lane.b32.xlu0 %v506, 127
        %v509 = vpop.permute.xlu0 %508
        %v511 = vmul.f32 %v506, %v509
        %v512 = vlaneseq
        %v513 = vshrl.u32 %v512, 7
        %v514 = vsub.s32 2, %v513
        %v515 = vrot.slane %v471, %v514
        %v516 = vlaneseq
        %v517 = vshrl.u32 %v516, 7
        %v518 = vsub.s32 2, %v517
        %v519 = vrot.slane %v472, %v518
        %520 = vset.pattern.permute.xlu0 2
        %521 = vperm.xlu0 %520, %v473
        %v522 = vpop.permute.xlu0 %521
        %v524 = vmin.f32 %v515, %v522
        %v525 = vmin.f32 %v519, %v522
        %v526 = vlaneseq
        %v527 = vshrl.u32 %v526, 7
        %v528 = vsub.s32 0, %v527
        %v529 = vrot.slane %v471, %v528
        %v530 = vlaneseq
        %v531 = vshrl.u32 %v530, 7
        %v532 = vsub.s32 0, %v531
        %v533 = vrot.slane %v472, %v532
        %534 = vset.pattern.permute.xlu0 0
        %535 = vperm.xlu0 %534, %v473
        %v536 = vpop.permute.xlu0 %535
        %v538 = vmax.f32 %v529, %v536
        %v539 = vmax.f32 %v533, %v536
        %v540 = vsub.f32 %v524, %v538
        %v541 = vsub.f32 %v525, %v539
        %v542 = vmax.f32 %v540, 0.0
        %v543 = vmax.f32 %v541, 0.0
        %v544 = vlaneseq
        %v545 = vshrl.u32 %v544, 7
        %v546 = vsub.s32 3, %v545
        %v547 = vrot.slane %v471, %v546
        %v548 = vlaneseq
        %v549 = vshrl.u32 %v548, 7
        %v550 = vsub.s32 3, %v549
        %v551 = vrot.slane %v472, %v550
        %552 = vset.pattern.permute.xlu0 3
        %553 = vperm.xlu0 %552, %v473
        %v554 = vpop.permute.xlu0 %553
        %v556 = vmin.f32 %v547, %v554
        %v557 = vmin.f32 %v551, %v554
        %v558 = vlaneseq
        %v559 = vshrl.u32 %v558, 7
        %v560 = vsub.s32 1, %v559
        %v561 = vrot.slane %v471, %v560
        %v562 = vlaneseq
        %v563 = vshrl.u32 %v562, 7
        %v564 = vsub.s32 1, %v563
        %v565 = vrot.slane %v472, %v564
        %566 = vset.pattern.permute.xlu0 1
        %567 = vperm.xlu0 %566, %v473
        %v568 = vpop.permute.xlu0 %567
        %v570 = vmax.f32 %v561, %v568
        %v571 = vmax.f32 %v565, %v568
        %v572 = vsub.f32 %v556, %v570
        %v573 = vsub.f32 %v557, %v571
        %v574 = vmax.f32 %v572, 0.0
        %v575 = vmax.f32 %v573, 0.0
        %v576 = vmul.f32 %v542, %v574
        %v577 = vmul.f32 %v543, %v575
        %v578 = vlaneseq
        %v579 = vshrl.u32 %v578, 7
        %v580 = vsub.s32 2, %v579
        %v581 = vrot.slane %v500, %v580
        %v582 = vlaneseq
        %v583 = vshrl.u32 %v582, 7
        %v584 = vsub.s32 2, %v583
        %v585 = vrot.slane %v501, %v584
        %587 = vset.pattern.permute.xlu0 2
        %588 = vperm.xlu0 %587, %v511
        %v589 = vpop.permute.xlu0 %588
        %v591 = vadd.f32 %v581, %v589
        %v592 = vadd.f32 %v585, %v589
        %v593 = vsub.f32 %v591, %v576
        %v594 = vsub.f32 %v592, %v577
        %v595 = vadd.f32 %v593, 1e-06
        %v596 = vadd.f32 %v594, 1e-06
        %v597 = vrcp.pop %v595
        %v598 = vmul.f32 %v576, %v597
        %v599 = vrcp.pop %v596
        %v600 = vmul.f32 %v577, %v599
        %vm601 = vcmp.gt.f32.partialorder %v473, 0.0
        %v602 = vsel %vm601, 1, 0
        %603 = vset.pattern.permute.xlu0 5
        %604 = vperm.xlu0 %603, %v602
        %v605 = vpop.permute.xlu0 %604
        %vm606 = vcmp.eq.s32.totalorder %v605, 1
        %v607 = vsel %vm606, %v598, -1e+09
        %v608 = vsel %vm606, %v600, -1e+09
        %v609 = vrot.slane %v607, 4
        %v610 = vmax.f32 %v607, %v609
        %v611 = vrot.slane %v610, 2
        %v612 = vmax.f32 %v610, %v611
        %v613 = vrot.slane %v612, 1
        %v614 = vmax.f32 %v612, %v613
        %v615 = vrot.slane %v608, 4
        %v616 = vmax.f32 %v608, %v615
        %v617 = vrot.slane %v616, 2
        %v618 = vmax.f32 %v616, %v617
        %v619 = vrot.slane %v618, 1
        %v620 = vmax.f32 %v618, %v619
        %v621 = vlaneseq
        %v622 = vshrl.u32 %v621, 7
        %vm623 = vcmp.eq.f32.partialorder %v607, %v614
        %vm624 = vcmp.eq.f32.partialorder %v608, %v620
        %v625 = vsel %vm623, %v622, 8
        %v626 = vsel %vm624, %v622, 8
        %v627 = vrot.slane %v625, 4
        %vm628 = vcmp.lt.s32.totalorder %v625, %v627
        %v629 = vsel %vm628, %v625, %v627
        %v630 = vrot.slane %v629, 2
        %vm631 = vcmp.lt.s32.totalorder %v629, %v630
        %v632 = vsel %vm631, %v629, %v630
        %v633 = vrot.slane %v632, 1
        %vm634 = vcmp.lt.s32.totalorder %v632, %v633
        %v635 = vsel %vm634, %v632, %v633
        %v636 = vrot.slane %v626, 4
        %vm637 = vcmp.lt.s32.totalorder %v626, %v636
        %v638 = vsel %vm637, %v626, %v636
        %v639 = vrot.slane %v638, 2
        %vm640 = vcmp.lt.s32.totalorder %v638, %v639
        %v641 = vsel %vm640, %v638, %v639
        %v642 = vrot.slane %v641, 1
        %vm643 = vcmp.lt.s32.totalorder %v641, %v642
        %v644 = vsel %vm643, %v641, %v642
        %vm645 = vcmp.eq.s32.totalorder %v622, %v635
        %vm646 = vcmp.eq.s32.totalorder %v622, %v644
        %v647 = vsel %vm645, 1, 0
        %v648 = vsel %vm646, 1, 0
        %v649 = vcvt.s32.f32 %v647
        %v650 = vcvt.s32.f32 %v648
        %v651 = vpack.c.bf16 %v649, %v649
        %v652 = vpack.c.bf16 %v650, %v650
        %vm653 = vcmp.ge.f32.partialorder %v614, 0.5
        %vm654 = vcmp.ge.f32.partialorder %v620, 0.5
        %v655 = vsel %vm653, 1.0, 0.0
        %v656 = vsel %vm654, 1.0, 0.0
        %v657 = vmul.f32 %v655, %v471
        %v658 = vmul.f32 %v656, %v472
        %vm659 = vcmp.gt.f32.partialorder %v657, 0.0
        %vm660 = vcmp.gt.f32.partialorder %v658, 0.0
        %v663 = vunpack.c.l.b16 %v474
        %v664 = vunpack.c.l.b16 %v475
        %v665 = vpack.c.b16 %v664, %v663
        %vm666 = vcmask 64512
        %v668 = vsel %vm666, %v665, 0
        %vm670 = vcmask 1043456
        %v672 = vsel %vm670, %v651, 0
        %v675 = vsel %vm670, %v652, 0
        %677 = vmatprep.subr.bf16.mxu0 %v675
        %678 = vmatpush1.bf16.msra.mxu0 %v672
        %679 = vmatprep.subr.bf16.mxu0 0
        %680 = vmatpush1.bf16.msra.mxu0 0
        %681 = vmatprep.subr.bf16.mxu0 0
        %682 = vmatpush1.bf16.msra.mxu0 0
        %683 = vmatprep.subr.bf16.mxu0 0
        %684 = vmatpush1.bf16.msra.mxu0 0
        %685 = vmatprep.subr.bf16.mxu0 0
        %686 = vmatpush1.bf16.msra.mxu0 0
        %687 = vmatprep.subr.bf16.mxu0 0
        %688 = vmatpush1.bf16.msra.mxu0 0
        %689 = vmatprep.subr.bf16.mxu0 0
        %690 = vmatpush1.bf16.msra.mxu0 0
        %691 = vmatprep.subr.bf16.mxu0 0
        %692 = vmatpush1.bf16.msra.mxu0 0
        %693 = vmatprep.subr.bf16.mxu0 0
        %694 = vmatpush1.bf16.msra.mxu0 0
        %695 = vmatprep.subr.bf16.mxu0 0
        %696 = vmatpush1.bf16.msra.mxu0 0
        %697 = vmatprep.subr.bf16.mxu0 0
        %698 = vmatpush1.bf16.msra.mxu0 0
        %699 = vmatprep.subr.bf16.mxu0 0
        %700 = vmatpush1.bf16.msra.mxu0 0
        %701 = vmatprep.subr.bf16.mxu0 0
        %702 = vmatpush1.bf16.msra.mxu0 0
        %703 = vmatprep.subr.bf16.mxu0 0
        %704 = vmatpush1.bf16.msra.mxu0 0
        %705 = vmatprep.subr.bf16.mxu0 0
        %706 = vmatpush1.bf16.msra.mxu0 0
        %707 = vmatprep.subr.bf16.mxu0 0
        %708 = vmatpush1.bf16.msra.mxu0 0
        %709 = vmatprep.mubr.bf16.mxu0 0
        %710 = vmatmul.mubr.bf16.gmra.mrb[0].mxu0 %v668
        %v711 = vpop.f32.mrb[0].mxu0
        %v712 = vadd.f32 0.0, %v711
        %v713 = vpop.f32.mrb[0].mxu0
        %v714 = vadd.f32 0.0, %v713
        %v715 = vpop.f32.mrb[0].mxu0
        %v716 = vadd.f32 0.0, %v715
        %v717 = vpop.f32.mrb[0].mxu0
        %v718 = vadd.f32 0.0, %v717
        %719 = vdwg.mxu0
        %v722 = vrot.slane %v712, 4
        %v723 = vrot.slane %v714, 4
        %v726 = vadd.f32 %v712, %v722
        %v727 = vadd.f32 %v714, %v723
        %v728 = vadd.f32 %v716, 0.5
        %v729 = vadd.f32 %v718, 0.5
        %v730 = vcvt.f32.s32.to.zero.pseudo %v728
        %v731 = vcvt.f32.s32.to.zero.pseudo %v729
        %v732 = vlaneseq
        %v733 = vshrl.u32 %v732, 7
        %v734 = vsub.s32 0, %v733
        %v735 = vrot.slane %v730, %v734
        %v736 = vlaneseq
        %v737 = vshrl.u32 %v736, 7
        %v738 = vsub.s32 0, %v737
        %v739 = vrot.slane %v731, %v738
        %vm740 = vcmp.eq.s32.totalorder %v622, %v735
        %vm741 = vcmp.eq.s32.totalorder %v622, %v739
        %v742 = vsel %vm659, 1, 0
        %v743 = vsel %vm660, 1, 0
        %v744 = vlaneseq
        %v745 = vshrl.u32 %v744, 7
        %v746 = vsub.s32 6, %v745
        %v747 = vrot.slane %v742, %v746
        %v748 = vlaneseq
        %v749 = vshrl.u32 %v748, 7
        %v750 = vsub.s32 6, %v749
        %v751 = vrot.slane %v743, %v750
        %vm752 = vcmp.eq.s32.totalorder %v747, 1
        %vm753 = vcmp.eq.s32.totalorder %v751, 1
        %vm754 = vmand %vm740, %vm752
        %vm755 = vmand %vm741, %vm753
        %v756 = vand.u32 2147450879, %v469
        %v757 = vsub.bf16 0, %v756
        %v759 = vmul.bf16 %v757, 1069105081
        %v760 = vpow.bf16.pop %v759
        %v761 = vadd.bf16 %v760, 1065369472
        %v762 = vrcp.bf16.pop %v761
        %v763 = vmul.bf16 1065369472, %v762
        %vm764 = vcmp.ge.bf16.partialorder %v469, 0
        %v765 = vsub.bf16 1065369472, %v763
        %v766 = vsel %vm764, %v763, %v765
        %v767 = vsub.bf16 1065369472, %v766
        %v768 = vsel %vm754, 1, 0
        %v769 = vsel %vm755, 1, 0
        %v770 = vcombine.low %v768, %v769
        %vm771 = vcmp.ne.s32.totalorder %v770, 0
        %v772 = vsel %vm771, 1, 0
        %v773 = vpack.c.b16 %v772, %v772
        %vm774 = vcmp.ne.s16.totalorder %v773, 0
        %v775 = vsel %vm774, %v766, %v767
        %v776 = vsub.bf16 1065369472, %v775
        %v777 = vmul.bf16 %v776, %v776
        %v778 = vmul.bf16 %v777, 1048592000
        %v779 = vmul.bf16 %v777, 1061175104
        %v780 = vsel %vm774, %v778, %v779
        %v781 = vunpack.c.l.bf16 %v760
        %v782 = vadd.f32 %v781, 1.0
        %v783 = vlog2.pop %v782
        %v784 = vmul.f32 %v783, 0.6931472
        %v785 = vmax.bf16 %v469, 0
        %v786 = vsel %vm774, %v469, 0
        %v787 = vsub.bf16 %v785, %v786
        %v788 = vunpack.c.l.bf16 %v787
        %v789 = vadd.f32 %v788, %v784
        %v790 = vunpack.c.l.bf16 %v780
        %v791 = vmul.f32 %v790, %v789
        %v793 = vcombine.high %v791, %v791
        %v795 = vsel %vm670, %v791, 0.0
        %v796 = vrot.slane %v795, 4
        %v797 = vadd.f32 %v795, %v796
        %v798 = vrot.slane %v797, 2
        %v799 = vadd.f32 %v797, %v798
        %v800 = vrot.slane %v799, 1
        %v801 = vadd.f32 %v799, %v800
        %v802 = vsel %vm670, %v793, 0.0
        %v803 = vrot.slane %v802, 4
        %v804 = vadd.f32 %v802, %v803
        %v805 = vrot.slane %v804, 2
        %v806 = vadd.f32 %v804, %v805
        %v807 = vrot.slane %v806, 1
        %v808 = vadd.f32 %v806, %v807
        %v811 = vrot.slane %v726, 6
        %v812 = vrot.slane %v727, 6
        %v815 = vsub.f32 %v726, %v811
        %v816 = vsub.f32 %v727, %v812
        %v817 = vmul.f32 %v815, 0.5
        %v818 = vmul.f32 %v816, 0.5
        %v821 = vrot.slane %v817, 2
        %v822 = vrot.slane %v818, 2
        %v825 = vadd.f32 %v726, %v821
        %v826 = vadd.f32 %v727, %v822
        %v827 = vsub.f32 %v825, %v492
        %v828 = vsub.f32 %v826, %v493
        %v829 = vrot.slane %v471, 4
        %v830 = vrot.slane %v472, 4
        %v833 = vmul.f32 %v827, %v829
        %v834 = vmul.f32 %v828, %v830
        %v835 = vmul.f32 %v833, 10.0
        %v836 = vmul.f32 %v834, 10.0
        %v837 = vrot.slane %v471, 2
        %v838 = vrot.slane %v472, 2
        %v841 = vmul.f32 %v815, %v837
        %v842 = vmul.f32 %v816, %v838
        %v845 = vrot.slane %v841, 4
        %v846 = vrot.slane %v842, 4
        %v849 = vsel %vm659, %v845, 1.0
        %v850 = vsel %vm660, %v846, 1.0
        %v851 = vlog2.pop %v849
        %v852 = vmul.f32 %v851, 0.6931472
        %v853 = vlog2.pop %v850
        %v854 = vmul.f32 %v853, 0.6931472
        %v855 = vmul.f32 %v852, 5.0
        %v856 = vmul.f32 %v854, 5.0
        %v857 = vrot.slane %v841, 5
        %v858 = vrot.slane %v842, 5
        %v861 = vsel %vm659, %v857, 1.0
        %v862 = vsel %vm660, %v858, 1.0
        %v863 = vlog2.pop %v861
        %v864 = vmul.f32 %v863, 0.6931472
        %v865 = vlog2.pop %v862
        %v866 = vmul.f32 %v865, 0.6931472
        %v867 = vmul.f32 %v864, 5.0
        %v868 = vmul.f32 %v866, 5.0
        %v871 = vrot.slane %v855, 4
        %v872 = vrot.slane %v856, 4
        %v877 = vrot.slane %v867, 3
        %v878 = vrot.slane %v868, 3
        %vm881 = vcmask 1041408
        %v882 = vsel %vm881, %v835, %v871
        %v883 = vsel %vm881, %v836, %v872
        %vm884 = vcmask 1042432
        %v885 = vsel %vm884, %v882, %v877
        %v886 = vsel %vm884, %v883, %v878
        %v889 = vcombine.low %v885, %v886
        %v891 = vsub.f32 %v470, %v889
        %v892 = vand.u32 2147483647, %v891
        %vm893 = vcmp.lt.f32.partialorder %v892, 1.0
        %v894 = vmul.f32 %v892, 0.5
        %v895 = vmul.f32 %v894, %v892
        %v896 = vsub.f32 %v892, 0.5
        %v897 = vsel %vm893, %v895, %v896
        %v899 = vcombine.high %v897, %v897
        %v901 = vsel %vm670, %v897, 0.0
        %v902 = vrot.slane %v901, 4
        %v903 = vadd.f32 %v901, %v902
        %v904 = vrot.slane %v903, 2
        %v905 = vadd.f32 %v903, %v904
        %v906 = vrot.slane %v905, 1
        %v907 = vadd.f32 %v905, %v906
        %v908 = vsel %vm670, %v899, 0.0
        %v909 = vrot.slane %v908, 4
        %v910 = vadd.f32 %v908, %v909
        %v911 = vrot.slane %v910, 2
        %v912 = vadd.f32 %v910, %v911
        %v913 = vrot.slane %v912, 1
        %v914 = vadd.f32 %v912, %v913
        %v915 = vmul.f32 %v907, %v657
        %v916 = vmul.f32 %v914, %v658
        %v917 = vld [vmem:[#allocation2] sm:$0x3]
        %v918 = vmul.f32 %v801, %v471
        %v919 = vmul.f32 %v808, %v472
        %v922 = vcombine.high %v918, %v919
        %v924 = vunpack.c.l.s4 1966171168
        %v925 = vunpack.c.0.s8 %v924
        %v926 = vlaneseq
        %v927 = vshrl.u32 %v926, 7
        %v928 = vsub.s32 %v925, %v927
        %v929 = vrot.slane %v922, %v928
        %v931 = vunpack.c.l.s4 1966171168
        %v932 = vunpack.c.0.s8 %v931
        %v933 = vlaneseq
        %v934 = vshrl.u32 %v933, 7
        %v935 = vsub.s32 %v932, %v934
        %v936 = vrot.slane %v929, %v935
        %v937 = vcombine.high %v936, %v936
        %v939 = vadd.f32 %v917, %v937
        %v940 = vlaneseq
        %vm941 = vcmp.ge.s32.totalorder %v940, 0
        %vm942 = vcmp.lt.s32.totalorder %v940, 256
        %vm943 = vmand %vm941, %vm942
        %944 = vst.msk [vmem:[#allocation2] sm:$0x3] %vm943, %v939
        %v945 = vld [vmem:[#allocation3] sm:$0x3]
        %v948 = vcombine.high %v915, %v916
        %v950 = vunpack.c.l.s4 1966171168
        %v951 = vunpack.c.0.s8 %v950
        %v952 = vlaneseq
        %v953 = vshrl.u32 %v952, 7
        %v954 = vsub.s32 %v951, %v953
        %v955 = vrot.slane %v948, %v954
        %v957 = vunpack.c.l.s4 1966171168
        %v958 = vunpack.c.0.s8 %v957
        %v959 = vlaneseq
        %v960 = vshrl.u32 %v959, 7
        %v961 = vsub.s32 %v958, %v960
        %v962 = vrot.slane %v955, %v961
        %v963 = vcombine.high %v962, %v962
        %v965 = vadd.f32 %v945, %v963
        %966 = vst.msk [vmem:[#allocation3] sm:$0x3] %vm943, %v965
        %v967 = vld [vmem:[#allocation4] sm:$0x3]
        %v970 = vcombine.high %v657, %v658
        %v972 = vunpack.c.l.s4 1966171168
        %v973 = vunpack.c.0.s8 %v972
        %v974 = vlaneseq
        %v975 = vshrl.u32 %v974, 7
        %v976 = vsub.s32 %v973, %v975
        %v977 = vrot.slane %v970, %v976
        %v979 = vunpack.c.l.s4 1966171168
        %v980 = vunpack.c.0.s8 %v979
        %v981 = vlaneseq
        %v982 = vshrl.u32 %v981, 7
        %v983 = vsub.s32 %v980, %v982
        %v984 = vrot.slane %v977, %v983
        %v985 = vcombine.high %v984, %v984
        %v987 = vadd.f32 %v967, %v985
        %988 = vst.msk [vmem:[#allocation4] sm:$0x3] %vm943, %v987
        // Predicated region
        $region53: #{tpu_custom_call.1} parent=39 // pred_check
          %p989 = pneg %p458
        $region54: #{tpu_custom_call.1} parent=39 // pred_check_branch
          %991 = sbr.rel (%p989) target = $region56
        $region55: #{tpu_custom_call.1} parent=39 // pred_region
          %v992 = vld [vmem:[#allocation2] sm:$0x3]
          %993 = vst.msk [vmem:[%s413] sm:$0x3] %vm943, %v992
          %v994 = vld [vmem:[#allocation3] sm:$0x3]
          %995 = vst.msk [vmem:[%s420] sm:$0x3] %vm943, %v994
          %v996 = vld [vmem:[#allocation4] sm:$0x3]
          %997 = vst.msk [vmem:[%s427] sm:$0x3] %vm943, %v996
        $region56: #{tpu_custom_call.1} parent=39 // pred_fallthru
          _
        %s998 = sand.u32 %s198, 1
        %s999 = scalar_lea.sflag [#allocation7], %s998
        %s1000 = sand.u32 %s198, 1
        %s1001 = smul.addr %s1000, 2
        %s1002 = scalar_lea.vmem [#allocation10], %s1001
        %s1003 = sand.u32 %s29, 1
        %s1004 = scalar_lea.sflag [#allocation12], %s1003
        %s1005 = sand.u32 %s226, 1
        %s1006 = smul.addr %s1005, 2
        %s1007 = scalar_lea.vmem [#allocation11], %s1006
        %s1008 = sand.u32 %s29, 1
        %s1009 = scalar_lea.sflag [#allocation12], %s1008
        %s1010 = sand.u32 %s254, 1
        %s1011 = smul.addr %s1010, 2
        %s1012 = scalar_lea.vmem [#allocation13], %s1011
        // Predicated region
        $region57: #{tpu_custom_call.1} parent=39 // pred_check
          %p1013 = pneg %p208
        $region58: #{tpu_custom_call.1} parent=39 // pred_check_branch
          %1015 = sbr.rel (%p1013) target = $region60
        $region59: #{tpu_custom_call.1} parent=39 // pred_region
          %s1017 = ssub.s32 32, 32
          %1018 = vsyncadd %s999, %s1017
          %s1019 = smul.addr %s35, 2
          %s1020 = smul.addr %s34, 2
          %s1021 = sadd.s32 %s1019, %s1020
          %s1022 = smul.addr %s1021, 16
          %s1023 = scalar_lea.hbm %s5, %s1022
          %s1025 = sshll.u32 %s1002, 4
          %s1026 = int_to_ptr.vmem [resolvable:$true] %s1025
          %1028 = dma.vmem_to_hbm [thread:$0]  %s1026, 32, %s1023, %s999
        $region60: #{tpu_custom_call.1} parent=39 // pred_fallthru
          _
        // Predicated region
        $region61: #{tpu_custom_call.1} parent=39 // pred_check
          %p1029 = pneg %p236
        $region62: #{tpu_custom_call.1} parent=39 // pred_check_branch
          %1031 = sbr.rel (%p1029) target = $region64
        $region63: #{tpu_custom_call.1} parent=39 // pred_region
          %s1033 = ssub.s32 32, 32
          %1034 = vsyncadd %s1004, %s1033
          %s1035 = smul.addr %s35, 2
          %s1036 = smul.addr %s34, 2
          %s1037 = sadd.s32 %s1035, %s1036
          %s1038 = smul.addr %s1037, 16
          %s1039 = scalar_lea.hbm %s6, %s1038
          %s1041 = sshll.u32 %s1007, 4
          %s1042 = int_to_ptr.vmem [resolvable:$true] %s1041
          %1044 = dma.vmem_to_hbm [thread:$0]  %s1042, 32, %s1039, %s1004
        $region64: #{tpu_custom_call.1} parent=39 // pred_fallthru
          _
        // Predicated region
        $region65: #{tpu_custom_call.1} parent=39 // pred_check
          %p1045 = pneg %p264
        $region66: #{tpu_custom_call.1} parent=39 // pred_check_branch
          %1047 = sbr.rel (%p1045) target = $region68
        $region67: #{tpu_custom_call.1} parent=39 // pred_region
          %s1049 = ssub.s32 32, 32
          %1050 = vsyncadd %s1009, %s1049
          %s1051 = smul.addr %s35, 2
          %s1052 = smul.addr %s34, 2
          %s1053 = sadd.s32 %s1051, %s1052
          %s1054 = smul.addr %s1053, 16
          %s1055 = scalar_lea.hbm %s7, %s1054
          %s1057 = sshll.u32 %s1012, 4
          %s1058 = int_to_ptr.vmem [resolvable:$true] %s1057
          %1060 = dma.vmem_to_hbm [thread:$0]  %s1058, 32, %s1055, %s1009
        $region68: #{tpu_custom_call.1} parent=39 // pred_fallthru
          _
      $region40: #{tpu_custom_call.1} parent=5 // pred_fallthru
        _
      %p1061 = scmp.le.s32.totalorder 2, %s24
      // Predicated region
      $region69: #{tpu_custom_call.1} parent=5 // pred_check
        %p1062 = pneg %p1061
      $region70: #{tpu_custom_call.1} parent=5 // pred_check_branch
        %1064 = sbr.rel (%p1062) target = $region72
      $region71: #{tpu_custom_call.1} parent=5 // pred_region
        %s1065 = ssub.s32 %s24, 2
        // Predicated region
        $region73: #{tpu_custom_call.1} parent=71 // pred_check
          %p1066 = pneg %p214
        $region74: #{tpu_custom_call.1} parent=71 // pred_check_branch
          %1068 = sbr.rel (%p1066) target = $region76
        $region75: #{tpu_custom_call.1} parent=71 // pred_region
          %s1069 = sand.u32 %s199, 1
          %s1070 = scalar_lea.sflag [#allocation7], %s1069
          %s1071 = sand.u32 %s199, 1
          %s1072 = smul.addr %s1071, 2
          %s1073 = scalar_lea.vmem [#allocation10], %s1072
          %1074 = dma.done %s1070, 32
        $region76: #{tpu_custom_call.1} parent=71 // pred_fallthru
          _
        // Predicated region
        $region77: #{tpu_custom_call.1} parent=71 // pred_check
          %p1075 = pneg %p242
        $region78: #{tpu_custom_call.1} parent=71 // pred_check_branch
          %1077 = sbr.rel (%p1075) target = $region80
        $region79: #{tpu_custom_call.1} parent=71 // pred_region
          %s1078 = sand.u32 %s30, 1
          %s1079 = scalar_lea.sflag [#allocation12], %s1078
          %s1080 = sand.u32 %s227, 1
          %s1081 = smul.addr %s1080, 2
          %s1082 = scalar_lea.vmem [#allocation11], %s1081
          %1083 = dma.done %s1079, 32
        $region80: #{tpu_custom_call.1} parent=71 // pred_fallthru
          _
        // Predicated region
        $region81: #{tpu_custom_call.1} parent=71 // pred_check
          %p1084 = pneg %p270
        $region82: #{tpu_custom_call.1} parent=71 // pred_check_branch
          %1086 = sbr.rel (%p1084) target = $region84
        $region83: #{tpu_custom_call.1} parent=71 // pred_region
          %s1087 = sand.u32 %s30, 1
          %s1088 = scalar_lea.sflag [#allocation12], %s1087
          %s1089 = sand.u32 %s255, 1
          %s1090 = smul.addr %s1089, 2
          %s1091 = scalar_lea.vmem [#allocation13], %s1090
          %1092 = dma.done %s1088, 32
        $region84: #{tpu_custom_call.1} parent=71 // pred_fallthru
          _
      $region72: #{tpu_custom_call.1} parent=5 // pred_fallthru
        _
    $region6: #{tpu_custom_call.1} parent=1 // loop_footer
      %s28 = sadd.s32 1, %s24
    $region7: #{tpu_custom_call.1} parent=1 // loop_footer_branch
      %23 = sbr.rel target = $region3
    $region8: #{tpu_custom_call.1} parent=1 // loop_exit
      _
    %1093 = vsyncpa [#allocation6], 1
    %s1094 = scalar_lea.sflag [#allocation6], 1
    %1095 = vsyncpa %s1094, 1
    %1096 = vsyncpa [#allocation9], 1
    %1097 = vsyncpa [#allocation7], 1
    %s1098 = scalar_lea.sflag [#allocation7], 1
    %1099 = vsyncpa %s1098, 1
    %1100 = vsyncpa [#allocation12], 1
    %s1101 = scalar_lea.sflag [#allocation12], 1
    %1102 = vsyncpa %s1101, 1

</llo_original>
